<compile_context>
chip_gen: v6e
topology: v6e:2x2x1
jax: 0.10.0
libtpu: 0.0.40
codegen_flags: <defaults>
</compile_context>

<pallas_src>
import math

import jax
import jax.numpy as jnp
from jax.experimental import pallas as pl
from jax.experimental.pallas import tpu as pltpu

# ----------------------- config (small, deterministic) -----------------------
B = 2           # batch
T = 8           # sequence length
C = 32          # n_embed (real, unpadded)
N_HEAD = 4      # n_head
HEAD = C // N_HEAD          # 8   (real head width)
CP = 128                    # lane-padded embedding width
HP = 128                    # lane-padded per-head width
EPS = 1e-6


# ----------------------------- Pallas kernel ---------------------------------
def block_kernel(x_ref, nw_ref, wq_ref, wk_ref, wv_ref,
                 watt_ref, wupgate_ref, wdown_ref, o_ref):
    Tt = x_ref.shape[1]
    hp = wq_ref.shape[1] // N_HEAD       # padded per-head width (128)
    hid = wdown_ref.shape[0]             # real MLP hidden width (4*C = 128)

    x = x_ref[0]                         # (T, CP) f32
    nw = nw_ref[...]                     # (1, CP) f32 — sublane-broadcast at multiply

    inv_c = 1.0 / C                      # divide by the REAL width; padded lanes are 0

    def rmsnorm(v):                      # f32 elementwise (VPU/EUP)
        ms = jnp.sum(v * v, axis=-1, keepdims=True) * inv_c
        return v * jax.lax.rsqrt(ms + EPS) * nw

    # ---------------- attention branch (1/sqrt(hs) pre-folded into wq) ----------------
    h1 = rmsnorm(x).astype(jnp.bfloat16)
    q = jnp.dot(h1, wq_ref[...], preferred_element_type=jnp.float32)   # (T, nh*HP)
    k = jnp.dot(h1, wk_ref[...], preferred_element_type=jnp.float32)
    v = jnp.dot(h1, wv_ref[...], preferred_element_type=jnp.float32)

    rows = jax.lax.broadcasted_iota(jnp.int32, (Tt, Tt), 0)
    cols = jax.lax.broadcasted_iota(jnp.int32, (Tt, Tt), 1)
    causal = rows >= cols

    ctxs = []
    for h in range(N_HEAD):              # unrolled; slices only at 128-lane boundaries
        sl = slice(h * hp, (h + 1) * hp)
        qh = q[:, sl].astype(jnp.bfloat16)          # (T, HP)
        kh = k[:, sl].astype(jnp.bfloat16)
        vh = v[:, sl].astype(jnp.bfloat16)
        s = jnp.einsum("td,sd->ts", qh, kh,
                       preferred_element_type=jnp.float32)             # (T, T) f32
        s = jnp.where(causal, s, -1e30)
        p = jnp.exp(s - jnp.max(s, axis=-1, keepdims=True))
        p = p / jnp.sum(p, axis=-1, keepdims=True)  # exact divide (tiny at T=8)
        ctxs.append(jnp.dot(p.astype(jnp.bfloat16), vh,
                            preferred_element_type=jnp.float32))       # (T, HP)
    y = jnp.concatenate(ctxs, axis=-1).astype(jnp.bfloat16)            # (T, nh*HP)

    att = jnp.dot(y, watt_ref[...], preferred_element_type=jnp.float32)  # (T, CP)
    x1 = x + att                                    # residual #1 (f32)

    # ---------------- MLP (SwiGLU) branch ----------------
    h2 = rmsnorm(x1).astype(jnp.bfloat16)
    ug = jnp.dot(h2, wupgate_ref[...], preferred_element_type=jnp.float32)  # (T, 2*hid)
    up = ug[:, :hid]
    gate = ug[:, hid:]
    hidden = (up * (gate * jax.nn.sigmoid(gate))).astype(jnp.bfloat16)  # up * SiLU(gate)
    mlp = jnp.dot(hidden, wdown_ref[...], preferred_element_type=jnp.float32)

    o_ref[0] = x1 + mlp                             # residual #2, lane-dense (T, 128)


# ------------------------------ wrapper --------------------------------------
@jax.jit
def block_forward(x_pad, norm_pad, wq, wk, wv, watt, wupgate, wdown):
    Bb, Tt, CPc = x_pad.shape
    HW = wq.shape[1]                 # N_HEAD * HP
    HID2 = wupgate.shape[1]          # 2 * hidden
    HID = wdown.shape[0]             # hidden
    grid_spec = pltpu.PrefetchScalarGridSpec(
        num_scalar_prefetch=0,
        grid=(Bb,),                                          # one step per batch element
        in_specs=[
            pl.BlockSpec((1, Tt, CPc), lambda b: (b, 0, 0)),  # x        (padded, f32)
            pl.BlockSpec((1, CPc), lambda b: (0, 0)),         # shared RMSNorm weight
            pl.BlockSpec((CPc, HW), lambda b: (0, 0)),         # wq (scale folded) bf16
            pl.BlockSpec((CPc, HW), lambda b: (0, 0)),         # wk               bf16
            pl.BlockSpec((CPc, HW), lambda b: (0, 0)),         # wv               bf16
            pl.BlockSpec((HW, CPc), lambda b: (0, 0)),         # att_proj         bf16
            pl.BlockSpec((CPc, HID2), lambda b: (0, 0)),       # fused up|gate    bf16
            pl.BlockSpec((HID, CPc), lambda b: (0, 0)),        # down_proj        bf16
        ],
        out_specs=pl.BlockSpec((1, Tt, CPc), lambda b: (b, 0, 0)),
    )
    return pl.pallas_call(
        block_kernel,
        out_shape=jax.ShapeDtypeStruct((Bb, Tt, CPc), jnp.float32),
        grid_spec=grid_spec,
        compiler_params=pltpu.CompilerParams(
            dimension_semantics=("parallel",)),               # 2 TCs on v7x
    )(x_pad, norm_pad, wq, wk, wv, watt, wupgate, wdown)


# --------------------------- pure-JAX reference -------------------------------
def block_reference(x, norm_w, wq_bf, wk_bf, wv_bf, watt_bf, wupgate_bf, wdown_bf):
    """Standard (unpadded) math with identical bf16 casts; scale is folded into wq_bf."""
    Bb, Tt, Cc = x.shape
    nh, hs = N_HEAD, Cc // N_HEAD
    hid = 4 * Cc
    x2 = x.reshape(Bb * Tt, Cc)
    nw = norm_w.reshape(1, Cc)

    def rmsnorm(v):
        ms = jnp.mean(v * v, axis=-1, keepdims=True)
        return v * jax.lax.rsqrt(ms + EPS) * nw

    h1 = rmsnorm(x2).astype(jnp.bfloat16)
    q = jnp.dot(h1, wq_bf, preferred_element_type=jnp.float32)
    k = jnp.dot(h1, wk_bf, preferred_element_type=jnp.float32)
    v = jnp.dot(h1, wv_bf, preferred_element_type=jnp.float32)

    def split_heads(m2d):
        return (m2d.reshape(Bb, Tt, nh, hs)
                    .transpose(0, 2, 1, 3)
                    .reshape(Bb * nh, Tt, hs))

    qh = split_heads(q).astype(jnp.bfloat16)
    kh = split_heads(k).astype(jnp.bfloat16)
    vh = split_heads(v).astype(jnp.bfloat16)

    s = jnp.einsum("gtd,gsd->gts", qh, kh, preferred_element_type=jnp.float32)
    mask = jnp.tril(jnp.ones((Tt, Tt), dtype=bool))[None]
    s = jnp.where(mask, s, -1e30)
    p = jax.nn.softmax(s, axis=-1)
    ctx = jnp.einsum("gts,gsd->gtd", p.astype(jnp.bfloat16), vh,
                     preferred_element_type=jnp.float32)
    y = (ctx.reshape(Bb, nh, Tt, hs).transpose(0, 2, 1, 3)
            .reshape(Bb * Tt, Cc).astype(jnp.bfloat16))
    x1 = x2 + jnp.dot(y, watt_bf, preferred_element_type=jnp.float32)

    h2 = rmsnorm(x1).astype(jnp.bfloat16)
    ug = jnp.dot(h2, wupgate_bf, preferred_element_type=jnp.float32)
    up, gate = ug[:, :hid], ug[:, hid:]
    hidden = (up * (gate * jax.nn.sigmoid(gate))).astype(jnp.bfloat16)
    mlp = jnp.dot(hidden, wdown_bf, preferred_element_type=jnp.float32)
    return (x1 + mlp).reshape(Bb, Tt, Cc)


# --------------------------- weight padding helpers ----------------------------
def pad_qkv_weight(w):
    """(C, C) -> (CP, N_HEAD*HP): zero-pad input rows to CP and each head's
    output columns from HEAD to HP (heads land in 128-lane-aligned blocks)."""
    w = w.reshape(C, N_HEAD, HEAD)
    w = jnp.pad(w, ((0, CP - C), (0, 0), (0, HP - HEAD)))
    return w.reshape(CP, N_HEAD * HP)


def pad_att_weight(w):
    """(C, C) head-major input rows -> (N_HEAD*HP, CP)."""
    w = w.reshape(N_HEAD, HEAD, C)
    w = jnp.pad(w, ((0, 0), (0, HP - HEAD), (0, CP - C)))
    return w.reshape(N_HEAD * HP, CP)


# --------------------------------- main ---------------------------------------
if __name__ == "__main__":
    key = jax.random.PRNGKey(0)
    kx, k1, k2, k3, k4, k5, k6, k7 = jax.random.split(key, 8)

    x = jax.random.normal(kx, (B, T, C), dtype=jnp.float32)

    # Deterministic GPT-style init (~N(0, 0.02)); weights stored transposed as
    # (in_features, out_features) so the kernel does plain row-major matmuls.
    std = 0.02
    norm_w = jnp.ones((1, C), dtype=jnp.float32)      # Block.norm, shared by both uses
    wq_t = (std * jax.random.normal(k1, (C, C))).astype(jnp.float32)
    wk_t = (std * jax.random.normal(k2, (C, C))).astype(jnp.float32)
    wv_t = (std * jax.random.normal(k3, (C, C))).astype(jnp.float32)
    watt_t = (std * jax.random.normal(k4, (C, C))).astype(jnp.float32)
    wup_t = (std * jax.random.normal(k5, (C, 4 * C))).astype(jnp.float32)
    wgate_t = (std * jax.random.normal(k6, (C, 4 * C))).astype(jnp.float32)
    wdown_t = (std * jax.random.normal(k7, (4 * C, C))).astype(jnp.float32)

    # ---- wrapper-side layout plumbing (done once, outside the kernel) ----
    scale = 1.0 / math.sqrt(HEAD)
    wq_scaled = wq_t * scale                           # fold 1/sqrt(hs) into q weights
    wupgate_t = jnp.concatenate([wup_t, wgate_t], axis=1)   # fused up|gate (C, 8C)

    # Lane-dense padded bf16 weights for the kernel.
    wq_pad = pad_qkv_weight(wq_scaled).astype(jnp.bfloat16)
    wk_pad = pad_qkv_weight(wk_t).astype(jnp.bfloat16)
    wv_pad = pad_qkv_weight(wv_t).astype(jnp.bfloat16)
    watt_pad = pad_att_weight(watt_t).astype(jnp.bfloat16)
    wupgate_pad = jnp.pad(wupgate_t, ((0, CP - C), (0, 0))).astype(jnp.bfloat16)
    wdown_pad = jnp.pad(wdown_t, ((0, 0), (0, CP - C))).astype(jnp.bfloat16)
    norm_pad = jnp.pad(norm_w, ((0, 0), (0, CP - C)))          # f32
    x_pad = jnp.pad(x, ((0, 0), (0, 0), (0, CP - C)))          # f32

    out_pad = block_forward(x_pad, norm_pad, wq_pad, wk_pad, wv_pad,
                            watt_pad, wupgate_pad, wdown_pad)
    out_pad = jax.block_until_ready(out_pad)
    out = out_pad[..., :C]

    # Reference uses the same bf16-cast (unpadded) weights; zero padding adds exactly 0.
    ref = block_reference(x, norm_w,
                          wq_scaled.astype(jnp.bfloat16), wk_t.astype(jnp.bfloat16),
                          wv_t.astype(jnp.bfloat16), watt_t.astype(jnp.bfloat16),
                          wupgate_t.astype(jnp.bfloat16), wdown_t.astype(jnp.bfloat16))

    assert out.shape == (B, T, C)
    assert jnp.allclose(out, ref, atol=5e-3, rtol=5e-3), "mismatch vs reference"

    print("KERNEL_OK")
</pallas_src>

<mosaic_0001>
module attributes {stable_mosaic.version = 11 : i64} {
  func.func @block_kernel(%arg0: i32, %arg1: memref<1x8x128xf32, #tpu.memory_space<vmem>>, %arg2: memref<1x128xf32, #tpu.memory_space<vmem>>, %arg3: memref<128x512xbf16, #tpu.memory_space<vmem>>, %arg4: memref<128x512xbf16, #tpu.memory_space<vmem>>, %arg5: memref<128x512xbf16, #tpu.memory_space<vmem>>, %arg6: memref<512x128xbf16, #tpu.memory_space<vmem>>, %arg7: memref<128x256xbf16, #tpu.memory_space<vmem>>, %arg8: memref<128x128xbf16, #tpu.memory_space<vmem>>, %arg9: memref<1x8x128xf32, #tpu.memory_space<vmem>>) attributes {dimension_semantics = [#tpu.dimension_semantics<parallel>], iteration_bounds = array<i64: 2>, scalar_prefetch = 0 : i64, scratch_operands = 0 : i64, tpu.core_type = #tpu.core_type<tc>, window_params = [{transform_indices = @transform_0, window_bounds = array<i64: 1, 8, 128>}, {pipeline_mode = #tpu.pipeline_mode<synchronous>, transform_indices = @transform_1, window_bounds = array<i64: 1, 128>}, {pipeline_mode = #tpu.pipeline_mode<synchronous>, transform_indices = @transform_2, window_bounds = array<i64: 128, 512>}, {pipeline_mode = #tpu.pipeline_mode<synchronous>, transform_indices = @transform_3, window_bounds = array<i64: 128, 512>}, {pipeline_mode = #tpu.pipeline_mode<synchronous>, transform_indices = @transform_4, window_bounds = array<i64: 128, 512>}, {pipeline_mode = #tpu.pipeline_mode<synchronous>, transform_indices = @transform_5, window_bounds = array<i64: 512, 128>}, {pipeline_mode = #tpu.pipeline_mode<synchronous>, transform_indices = @transform_6, window_bounds = array<i64: 128, 256>}, {pipeline_mode = #tpu.pipeline_mode<synchronous>, transform_indices = @transform_7, window_bounds = array<i64: 128, 128>}, {transform_indices = @transform_8, window_bounds = array<i64: 1, 8, 128>}]} {
    %c0 = arith.constant 0 : index
    %c0_0 = arith.constant 0 : index
    %c0_1 = arith.constant 0 : index
    %0 = vector.load %arg1[%c0, %c0_0, %c0_1] : memref<1x8x128xf32, #tpu.memory_space<vmem>>, vector<1x8x128xf32>
    %1 = vector.shape_cast %0 : vector<1x8x128xf32> to vector<8x128xf32>
    %c0_2 = arith.constant 0 : index
    %c0_3 = arith.constant 0 : index
    %2 = vector.load %arg2[%c0_2, %c0_3] : memref<1x128xf32, #tpu.memory_space<vmem>>, vector<1x128xf32>
    %3 = arith.mulf %1, %1 : vector<8x128xf32>
    %cst = arith.constant dense<0.000000e+00> : vector<8xf32>
    %4 = vector.multi_reduction <add>, %3, %cst [1] : vector<8x128xf32> to vector<8xf32>
    %5 = vector.shape_cast %4 : vector<8xf32> to vector<8x1xf32>
    %cst_4 = arith.constant 3.125000e-02 : f32
    %6 = vector.broadcast %cst_4 : f32 to vector<8x1xf32>
    %7 = arith.mulf %5, %6 : vector<8x1xf32>
    %cst_5 = arith.constant 9.99999997E-7 : f32
    %8 = vector.broadcast %cst_5 : f32 to vector<8x1xf32>
    %9 = arith.addf %7, %8 : vector<8x1xf32>
    %10 = math.rsqrt %9 : vector<8x1xf32>
    %11 = vector.broadcast %10 : vector<8x1xf32> to vector<8x128xf32>
    %12 = arith.mulf %1, %11 : vector<8x128xf32>
    %13 = vector.broadcast %2 : vector<1x128xf32> to vector<8x128xf32>
    %14 = arith.mulf %12, %13 : vector<8x128xf32>
    %15 = arith.truncf %14 : vector<8x128xf32> to vector<8x128xbf16>
    %c0_6 = arith.constant 0 : index
    %c0_7 = arith.constant 0 : index
    %16 = vector.load %arg3[%c0_6, %c0_7] : memref<128x512xbf16, #tpu.memory_space<vmem>>, vector<128x512xbf16>
    %cst_8 = arith.constant dense<0.000000e+00> : vector<8x512xf32>
    %17 = tpu.matmul %15, %16, %cst_8 {dimension_numbers = #tpu.dot_dimension_numbers<[1], [0], [0], [1], [0, 0, 1, 1], [], []>} : vector<8x128xbf16>, vector<128x512xbf16>, vector<8x512xf32> -> vector<8x512xf32>
    %c0_9 = arith.constant 0 : index
    %c0_10 = arith.constant 0 : index
    %18 = vector.load %arg4[%c0_9, %c0_10] : memref<128x512xbf16, #tpu.memory_space<vmem>>, vector<128x512xbf16>
    %cst_11 = arith.constant dense<0.000000e+00> : vector<8x512xf32>
    %19 = tpu.matmul %15, %18, %cst_11 {dimension_numbers = #tpu.dot_dimension_numbers<[1], [0], [0], [1], [0, 0, 1, 1], [], []>} : vector<8x128xbf16>, vector<128x512xbf16>, vector<8x512xf32> -> vector<8x512xf32>
    %c0_12 = arith.constant 0 : index
    %c0_13 = arith.constant 0 : index
    %20 = vector.load %arg5[%c0_12, %c0_13] : memref<128x512xbf16, #tpu.memory_space<vmem>>, vector<128x512xbf16>
    %cst_14 = arith.constant dense<0.000000e+00> : vector<8x512xf32>
    %21 = tpu.matmul %15, %20, %cst_14 {dimension_numbers = #tpu.dot_dimension_numbers<[1], [0], [0], [1], [0, 0, 1, 1], [], []>} : vector<8x128xbf16>, vector<128x512xbf16>, vector<8x512xf32> -> vector<8x512xf32>
    %22 = tpu.iota {dimensions = array<i32: 0>} : vector<8x8xi32>
    %23 = tpu.iota {dimensions = array<i32: 1>} : vector<8x8xi32>
    %24 = arith.cmpi sge, %22, %23 : vector<8x8xi32>
    %25 = vector.extract_strided_slice %17 {offsets = [0, 0], sizes = [8, 128], strides = [1, 1]} : vector<8x512xf32> to vector<8x128xf32>
    %26 = arith.truncf %25 : vector<8x128xf32> to vector<8x128xbf16>
    %27 = vector.extract_strided_slice %19 {offsets = [0, 0], sizes = [8, 128], strides = [1, 1]} : vector<8x512xf32> to vector<8x128xf32>
    %28 = arith.truncf %27 : vector<8x128xf32> to vector<8x128xbf16>
    %29 = vector.extract_strided_slice %21 {offsets = [0, 0], sizes = [8, 128], strides = [1, 1]} : vector<8x512xf32> to vector<8x128xf32>
    %30 = arith.truncf %29 : vector<8x128xf32> to vector<8x128xbf16>
    "tpu.trace_start"() <{level = 10 : i32, message = "td,sd->ts"}> : () -> ()
    %cst_15 = arith.constant dense<0.000000e+00> : vector<8x8xf32>
    %31 = tpu.matmul %26, %28, %cst_15 {dimension_numbers = #tpu.dot_dimension_numbers<[1], [1], [0], [0], [0, 0, 1, 0], [], []>} : vector<8x128xbf16>, vector<8x128xbf16>, vector<8x8xf32> -> vector<8x8xf32>
    %cst_16 = arith.constant -1.000000e+30 : f32
    "tpu.trace_stop"() : () -> ()
    %32 = vector.broadcast %cst_16 : f32 to vector<8x8xf32>
    %33 = arith.select %24, %31, %32 : vector<8x8xi1>, vector<8x8xf32>
    %cst_17 = arith.constant dense<0xFF800000> : vector<8xf32>
    %34 = vector.multi_reduction <maximumf>, %33, %cst_17 [1] : vector<8x8xf32> to vector<8xf32>
    %35 = vector.shape_cast %34 : vector<8xf32> to vector<8x1xf32>
    %36 = vector.broadcast %35 : vector<8x1xf32> to vector<8x8xf32>
    %37 = arith.subf %33, %36 : vector<8x8xf32>
    %38 = math.exp %37 : vector<8x8xf32>
    %cst_18 = arith.constant dense<0.000000e+00> : vector<8xf32>
    %39 = vector.multi_reduction <add>, %38, %cst_18 [1] : vector<8x8xf32> to vector<8xf32>
    %40 = vector.shape_cast %39 : vector<8xf32> to vector<8x1xf32>
    %41 = vector.broadcast %40 : vector<8x1xf32> to vector<8x8xf32>
    %42 = arith.divf %38, %41 : vector<8x8xf32>
    %43 = arith.truncf %42 : vector<8x8xf32> to vector<8x8xbf16>
    %cst_19 = arith.constant dense<0.000000e+00> : vector<8x128xf32>
    %44 = tpu.matmul %43, %30, %cst_19 {dimension_numbers = #tpu.dot_dimension_numbers<[1], [0], [0], [1], [0, 0, 1, 1], [], []>} : vector<8x8xbf16>, vector<8x128xbf16>, vector<8x128xf32> -> vector<8x128xf32>
    %45 = vector.extract_strided_slice %17 {offsets = [0, 128], sizes = [8, 128], strides = [1, 1]} : vector<8x512xf32> to vector<8x128xf32>
    %46 = arith.truncf %45 : vector<8x128xf32> to vector<8x128xbf16>
    %47 = vector.extract_strided_slice %19 {offsets = [0, 128], sizes = [8, 128], strides = [1, 1]} : vector<8x512xf32> to vector<8x128xf32>
    %48 = arith.truncf %47 : vector<8x128xf32> to vector<8x128xbf16>
    %49 = vector.extract_strided_slice %21 {offsets = [0, 128], sizes = [8, 128], strides = [1, 1]} : vector<8x512xf32> to vector<8x128xf32>
    %50 = arith.truncf %49 : vector<8x128xf32> to vector<8x128xbf16>
    "tpu.trace_start"() <{level = 10 : i32, message = "td,sd->ts"}> : () -> ()
    %cst_20 = arith.constant dense<0.000000e+00> : vector<8x8xf32>
    %51 = tpu.matmul %46, %48, %cst_20 {dimension_numbers = #tpu.dot_dimension_numbers<[1], [1], [0], [0], [0, 0, 1, 0], [], []>} : vector<8x128xbf16>, vector<8x128xbf16>, vector<8x8xf32> -> vector<8x8xf32>
    %cst_21 = arith.constant -1.000000e+30 : f32
    "tpu.trace_stop"() : () -> ()
    %52 = vector.broadcast %cst_21 : f32 to vector<8x8xf32>
    %53 = arith.select %24, %51, %52 : vector<8x8xi1>, vector<8x8xf32>
    %cst_22 = arith.constant dense<0xFF800000> : vector<8xf32>
    %54 = vector.multi_reduction <maximumf>, %53, %cst_22 [1] : vector<8x8xf32> to vector<8xf32>
    %55 = vector.shape_cast %54 : vector<8xf32> to vector<8x1xf32>
    %56 = vector.broadcast %55 : vector<8x1xf32> to vector<8x8xf32>
    %57 = arith.subf %53, %56 : vector<8x8xf32>
    %58 = math.exp %57 : vector<8x8xf32>
    %cst_23 = arith.constant dense<0.000000e+00> : vector<8xf32>
    %59 = vector.multi_reduction <add>, %58, %cst_23 [1] : vector<8x8xf32> to vector<8xf32>
    %60 = vector.shape_cast %59 : vector<8xf32> to vector<8x1xf32>
    %61 = vector.broadcast %60 : vector<8x1xf32> to vector<8x8xf32>
    %62 = arith.divf %58, %61 : vector<8x8xf32>
    %63 = arith.truncf %62 : vector<8x8xf32> to vector<8x8xbf16>
    %cst_24 = arith.constant dense<0.000000e+00> : vector<8x128xf32>
    %64 = tpu.matmul %63, %50, %cst_24 {dimension_numbers = #tpu.dot_dimension_numbers<[1], [0], [0], [1], [0, 0, 1, 1], [], []>} : vector<8x8xbf16>, vector<8x128xbf16>, vector<8x128xf32> -> vector<8x128xf32>
    %65 = vector.extract_strided_slice %17 {offsets = [0, 256], sizes = [8, 128], strides = [1, 1]} : vector<8x512xf32> to vector<8x128xf32>
    %66 = arith.truncf %65 : vector<8x128xf32> to vector<8x128xbf16>
    %67 = vector.extract_strided_slice %19 {offsets = [0, 256], sizes = [8, 128], strides = [1, 1]} : vector<8x512xf32> to vector<8x128xf32>
    %68 = arith.truncf %67 : vector<8x128xf32> to vector<8x128xbf16>
    %69 = vector.extract_strided_slice %21 {offsets = [0, 256], sizes = [8, 128], strides = [1, 1]} : vector<8x512xf32> to vector<8x128xf32>
    %70 = arith.truncf %69 : vector<8x128xf32> to vector<8x128xbf16>
    "tpu.trace_start"() <{level = 10 : i32, message = "td,sd->ts"}> : () -> ()
    %cst_25 = arith.constant dense<0.000000e+00> : vector<8x8xf32>
    %71 = tpu.matmul %66, %68, %cst_25 {dimension_numbers = #tpu.dot_dimension_numbers<[1], [1], [0], [0], [0, 0, 1, 0], [], []>} : vector<8x128xbf16>, vector<8x128xbf16>, vector<8x8xf32> -> vector<8x8xf32>
    %cst_26 = arith.constant -1.000000e+30 : f32
    "tpu.trace_stop"() : () -> ()
    %72 = vector.broadcast %cst_26 : f32 to vector<8x8xf32>
    %73 = arith.select %24, %71, %72 : vector<8x8xi1>, vector<8x8xf32>
    %cst_27 = arith.constant dense<0xFF800000> : vector<8xf32>
    %74 = vector.multi_reduction <maximumf>, %73, %cst_27 [1] : vector<8x8xf32> to vector<8xf32>
    %75 = vector.shape_cast %74 : vector<8xf32> to vector<8x1xf32>
    %76 = vector.broadcast %75 : vector<8x1xf32> to vector<8x8xf32>
    %77 = arith.subf %73, %76 : vector<8x8xf32>
    %78 = math.exp %77 : vector<8x8xf32>
    %cst_28 = arith.constant dense<0.000000e+00> : vector<8xf32>
    %79 = vector.multi_reduction <add>, %78, %cst_28 [1] : vector<8x8xf32> to vector<8xf32>
    %80 = vector.shape_cast %79 : vector<8xf32> to vector<8x1xf32>
    %81 = vector.broadcast %80 : vector<8x1xf32> to vector<8x8xf32>
    %82 = arith.divf %78, %81 : vector<8x8xf32>
    %83 = arith.truncf %82 : vector<8x8xf32> to vector<8x8xbf16>
    %cst_29 = arith.constant dense<0.000000e+00> : vector<8x128xf32>
    %84 = tpu.matmul %83, %70, %cst_29 {dimension_numbers = #tpu.dot_dimension_numbers<[1], [0], [0], [1], [0, 0, 1, 1], [], []>} : vector<8x8xbf16>, vector<8x128xbf16>, vector<8x128xf32> -> vector<8x128xf32>
    %85 = vector.extract_strided_slice %17 {offsets = [0, 384], sizes = [8, 128], strides = [1, 1]} : vector<8x512xf32> to vector<8x128xf32>
    %86 = arith.truncf %85 : vector<8x128xf32> to vector<8x128xbf16>
    %87 = vector.extract_strided_slice %19 {offsets = [0, 384], sizes = [8, 128], strides = [1, 1]} : vector<8x512xf32> to vector<8x128xf32>
    %88 = arith.truncf %87 : vector<8x128xf32> to vector<8x128xbf16>
    %89 = vector.extract_strided_slice %21 {offsets = [0, 384], sizes = [8, 128], strides = [1, 1]} : vector<8x512xf32> to vector<8x128xf32>
    %90 = arith.truncf %89 : vector<8x128xf32> to vector<8x128xbf16>
    "tpu.trace_start"() <{level = 10 : i32, message = "td,sd->ts"}> : () -> ()
    %cst_30 = arith.constant dense<0.000000e+00> : vector<8x8xf32>
    %91 = tpu.matmul %86, %88, %cst_30 {dimension_numbers = #tpu.dot_dimension_numbers<[1], [1], [0], [0], [0, 0, 1, 0], [], []>} : vector<8x128xbf16>, vector<8x128xbf16>, vector<8x8xf32> -> vector<8x8xf32>
    %cst_31 = arith.constant -1.000000e+30 : f32
    "tpu.trace_stop"() : () -> ()
    %92 = vector.broadcast %cst_31 : f32 to vector<8x8xf32>
    %93 = arith.select %24, %91, %92 : vector<8x8xi1>, vector<8x8xf32>
    %cst_32 = arith.constant dense<0xFF800000> : vector<8xf32>
    %94 = vector.multi_reduction <maximumf>, %93, %cst_32 [1] : vector<8x8xf32> to vector<8xf32>
    %95 = vector.shape_cast %94 : vector<8xf32> to vector<8x1xf32>
    %96 = vector.broadcast %95 : vector<8x1xf32> to vector<8x8xf32>
    %97 = arith.subf %93, %96 : vector<8x8xf32>
    %98 = math.exp %97 : vector<8x8xf32>
    %cst_33 = arith.constant dense<0.000000e+00> : vector<8xf32>
    %99 = vector.multi_reduction <add>, %98, %cst_33 [1] : vector<8x8xf32> to vector<8xf32>
    %100 = vector.shape_cast %99 : vector<8xf32> to vector<8x1xf32>
    %101 = vector.broadcast %100 : vector<8x1xf32> to vector<8x8xf32>
    %102 = arith.divf %98, %101 : vector<8x8xf32>
    %103 = arith.truncf %102 : vector<8x8xf32> to vector<8x8xbf16>
    %cst_34 = arith.constant dense<0.000000e+00> : vector<8x128xf32>
    %104 = tpu.matmul %103, %90, %cst_34 {dimension_numbers = #tpu.dot_dimension_numbers<[1], [0], [0], [1], [0, 0, 1, 1], [], []>} : vector<8x8xbf16>, vector<8x128xbf16>, vector<8x128xf32> -> vector<8x128xf32>
    %105 = tpu.concatenate %44, %64, %84, %104 in 1 : vector<8x128xf32>, vector<8x128xf32>, vector<8x128xf32>, vector<8x128xf32> -> vector<8x512xf32>
    %106 = arith.truncf %105 : vector<8x512xf32> to vector<8x512xbf16>
    %c0_35 = arith.constant 0 : index
    %c0_36 = arith.constant 0 : index
    %107 = vector.load %arg6[%c0_35, %c0_36] : memref<512x128xbf16, #tpu.memory_space<vmem>>, vector<512x128xbf16>
    %cst_37 = arith.constant dense<0.000000e+00> : vector<8x128xf32>
    %108 = tpu.matmul %106, %107, %cst_37 {dimension_numbers = #tpu.dot_dimension_numbers<[1], [0], [0], [1], [0, 0, 1, 1], [], []>} : vector<8x512xbf16>, vector<512x128xbf16>, vector<8x128xf32> -> vector<8x128xf32>
    %109 = arith.addf %1, %108 : vector<8x128xf32>
    %110 = arith.mulf %109, %109 : vector<8x128xf32>
    %cst_38 = arith.constant dense<0.000000e+00> : vector<8xf32>
    %111 = vector.multi_reduction <add>, %110, %cst_38 [1] : vector<8x128xf32> to vector<8xf32>
    %112 = vector.shape_cast %111 : vector<8xf32> to vector<8x1xf32>
    %cst_39 = arith.constant 3.125000e-02 : f32
    %113 = vector.broadcast %cst_39 : f32 to vector<8x1xf32>
    %114 = arith.mulf %112, %113 : vector<8x1xf32>
    %cst_40 = arith.constant 9.99999997E-7 : f32
    %115 = vector.broadcast %cst_40 : f32 to vector<8x1xf32>
    %116 = arith.addf %114, %115 : vector<8x1xf32>
    %117 = math.rsqrt %116 : vector<8x1xf32>
    %118 = vector.broadcast %117 : vector<8x1xf32> to vector<8x128xf32>
    %119 = arith.mulf %109, %118 : vector<8x128xf32>
    %120 = vector.broadcast %2 : vector<1x128xf32> to vector<8x128xf32>
    %121 = arith.mulf %119, %120 : vector<8x128xf32>
    %122 = arith.truncf %121 : vector<8x128xf32> to vector<8x128xbf16>
    %c0_41 = arith.constant 0 : index
    %c0_42 = arith.constant 0 : index
    %123 = vector.load %arg7[%c0_41, %c0_42] : memref<128x256xbf16, #tpu.memory_space<vmem>>, vector<128x256xbf16>
    %cst_43 = arith.constant dense<0.000000e+00> : vector<8x256xf32>
    %124 = tpu.matmul %122, %123, %cst_43 {dimension_numbers = #tpu.dot_dimension_numbers<[1], [0], [0], [1], [0, 0, 1, 1], [], []>} : vector<8x128xbf16>, vector<128x256xbf16>, vector<8x256xf32> -> vector<8x256xf32>
    %125 = vector.extract_strided_slice %124 {offsets = [0, 0], sizes = [8, 128], strides = [1, 1]} : vector<8x256xf32> to vector<8x128xf32>
    %126 = vector.extract_strided_slice %124 {offsets = [0, 128], sizes = [8, 128], strides = [1, 1]} : vector<8x256xf32> to vector<8x128xf32>
    %127 = arith.negf %126 : vector<8x128xf32>
    %128 = math.exp %127 : vector<8x128xf32>
    %cst_44 = arith.constant 1.000000e+00 : f32
    %129 = vector.broadcast %cst_44 : f32 to vector<8x128xf32>
    %130 = arith.addf %129, %128 : vector<8x128xf32>
    %131 = arith.divf %129, %130 : vector<8x128xf32>
    %132 = arith.mulf %126, %131 : vector<8x128xf32>
    %133 = arith.mulf %125, %132 : vector<8x128xf32>
    %134 = arith.truncf %133 : vector<8x128xf32> to vector<8x128xbf16>
    %c0_45 = arith.constant 0 : index
    %c0_46 = arith.constant 0 : index
    %135 = vector.load %arg8[%c0_45, %c0_46] : memref<128x128xbf16, #tpu.memory_space<vmem>>, vector<128x128xbf16>
    %cst_47 = arith.constant dense<0.000000e+00> : vector<8x128xf32>
    %136 = tpu.matmul %134, %135, %cst_47 {dimension_numbers = #tpu.dot_dimension_numbers<[1], [0], [0], [1], [0, 0, 1, 1], [], []>} : vector<8x128xbf16>, vector<128x128xbf16>, vector<8x128xf32> -> vector<8x128xf32>
    %137 = arith.addf %109, %136 : vector<8x128xf32>
    %c0_48 = arith.constant 0 : index
    %c0_49 = arith.constant 0 : index
    %c0_50 = arith.constant 0 : index
    %138 = vector.load %arg9[%c0_48, %c0_49, %c0_50] : memref<1x8x128xf32, #tpu.memory_space<vmem>>, vector<1x8x128xf32>
    %139 = vector.shape_cast %138 : vector<1x8x128xf32> to vector<8x128xf32>
    %140 = vector.shape_cast %137 : vector<8x128xf32> to vector<1x8x128xf32>
    tpu.vector_store %arg9[%c0_48, %c0_49, %c0_50], %140 {strides = array<i32>} : memref<1x8x128xf32, #tpu.memory_space<vmem>>, vector<1x8x128xf32>,
    return
  }
  func.func @transform_0(%arg0: i32) -> (i32, i32, i32) {
    %c0_i32 = arith.constant 0 : i32
    %c0_i32_0 = arith.constant 0 : i32
    %c0_i32_1 = arith.constant 0 : i32
    return %arg0, %c0_i32, %c0_i32_0 : i32, i32, i32
  }
  func.func @transform_1(%arg0: i32) -> (i32, i32) {
    %c0_i32 = arith.constant 0 : i32
    %c0_i32_0 = arith.constant 0 : i32
    %c0_i32_1 = arith.constant 0 : i32
    return %c0_i32, %c0_i32_0 : i32, i32
  }
  func.func @transform_2(%arg0: i32) -> (i32, i32) {
    %c0_i32 = arith.constant 0 : i32
    %c0_i32_0 = arith.constant 0 : i32
    %c0_i32_1 = arith.constant 0 : i32
    return %c0_i32, %c0_i32_0 : i32, i32
  }
  func.func @transform_3(%arg0: i32) -> (i32, i32) {
    %c0_i32 = arith.constant 0 : i32
    %c0_i32_0 = arith.constant 0 : i32
    %c0_i32_1 = arith.constant 0 : i32
    return %c0_i32, %c0_i32_0 : i32, i32
  }
  func.func @transform_4(%arg0: i32) -> (i32, i32) {
    %c0_i32 = arith.constant 0 : i32
    %c0_i32_0 = arith.constant 0 : i32
    %c0_i32_1 = arith.constant 0 : i32
    return %c0_i32, %c0_i32_0 : i32, i32
  }
  func.func @transform_5(%arg0: i32) -> (i32, i32) {
    %c0_i32 = arith.constant 0 : i32
    %c0_i32_0 = arith.constant 0 : i32
    %c0_i32_1 = arith.constant 0 : i32
    return %c0_i32, %c0_i32_0 : i32, i32
  }
  func.func @transform_6(%arg0: i32) -> (i32, i32) {
    %c0_i32 = arith.constant 0 : i32
    %c0_i32_0 = arith.constant 0 : i32
    %c0_i32_1 = arith.constant 0 : i32
    return %c0_i32, %c0_i32_0 : i32, i32
  }
  func.func @transform_7(%arg0: i32) -> (i32, i32) {
    %c0_i32 = arith.constant 0 : i32
    %c0_i32_0 = arith.constant 0 : i32
    %c0_i32_1 = arith.constant 0 : i32
    return %c0_i32, %c0_i32_0 : i32, i32
  }
  func.func @transform_8(%arg0: i32) -> (i32, i32, i32) {
    %c0_i32 = arith.constant 0 : i32
    %c0_i32_0 = arith.constant 0 : i32
    %c0_i32_1 = arith.constant 0 : i32
    return %arg0, %c0_i32, %c0_i32_0 : i32, i32, i32
  }
}

</mosaic_0001>

<llo_original>
// kernel: block_forward.1
$region0: #{block_forward.1}
  #allocation0 [shape = 'u32[]', space=smem, size = 0x4, offset = 0x4, fixed_abs, tag = 'smem constant byte address 0x4 - core index']
  #allocation1 [shape = 'u32[144,128]{1,0:T(1,128)}', space=vmem, size = 0x12000, scoped, tag = 'internal scratch']
  %s0 = inlined_call_operand.hbm [shape: f32[2,8,128], index: 0, kind: input, shape index: {}]
  %s1 = inlined_call_operand.vmem [shape: f32[1,128], index: 1, kind: input, shape index: {}]
  %s2 = inlined_call_operand.hbm [shape: bf16[128,512], index: 2, kind: input, shape index: {}]
  %s3 = inlined_call_operand.hbm [shape: bf16[128,512], index: 3, kind: input, shape index: {}]
  %s4 = inlined_call_operand.hbm [shape: bf16[128,512], index: 4, kind: input, shape index: {}]
  %s5 = inlined_call_operand.hbm [shape: bf16[512,128], index: 5, kind: input, shape index: {}]
  %s6 = inlined_call_operand.hbm [shape: bf16[128,256], index: 6, kind: input, shape index: {}]
  %s7 = inlined_call_operand.hbm [shape: bf16[128,128], index: 7, kind: input, shape index: {}]
  %s8 = inlined_call_operand.hbm [shape: f32[2,8,128], index: 8, kind: output, shape index: {}]
  %s9 = sld [smem:[#allocation0]]
  $region93: #{block_forward.1} parent=0
    _
  %s11 = ssub.s32 1, %s9
  %s12 = scalar_select 0, %s11, %s9
  $region1: #{block_forward.1} parent=0
    #allocation2 [shape = 'u8[8192]{0}', space=vmem, size = 0x2000, scoped, tag = 'input window, operand 0']
    #allocation3 [shape = 's32[2]{0}', space=sflag, size = 0x8, scoped, tag = 'scoped memory for block_forward.1']
    #allocation4 [shape = 's32[2]{0}', space=sflag, size = 0x8, scoped, tag = 'scoped memory for block_forward.1']
    #allocation5 [shape = 'u8[131072]{0}', space=vmem, size = 0x20000, scoped, tag = 'input window, operand 2, single buffered']
    #allocation6 [shape = 's32[1]{0}', space=sflag, size = 0x4, scoped, tag = 'scoped memory for block_forward.1']
    #allocation7 [shape = 'u8[131072]{0}', space=vmem, size = 0x20000, scoped, tag = 'input window, operand 3, single buffered']
    #allocation8 [shape = 'u8[131072]{0}', space=vmem, size = 0x20000, scoped, tag = 'input window, operand 4, single buffered']
    #allocation9 [shape = 's32[1]{0}', space=sflag, size = 0x4, scoped, tag = 'scoped memory for block_forward.1']
    #allocation10 [shape = 'u8[131072]{0}', space=vmem, size = 0x20000, scoped, tag = 'input window, operand 5, single buffered']
    #allocation11 [shape = 'u8[65536]{0}', space=vmem, size = 0x10000, scoped, tag = 'input window, operand 6, single buffered']
    #allocation12 [shape = 's32[1]{0}', space=sflag, size = 0x4, scoped, tag = 'scoped memory for block_forward.1']
    #allocation13 [shape = 'u8[32768]{0}', space=vmem, size = 0x8000, scoped, tag = 'input window, operand 7, single buffered']
    #allocation14 [shape = 'u8[8192]{0}', space=vmem, size = 0x2000, scoped, tag = 'output window, operand 0']
    %13 = vsyncpa [#allocation3], 0
    %s14 = scalar_lea.sflag [#allocation3], 1
    %15 = vsyncpa %s14, 0
    %16 = vsyncpa [#allocation6], 0
    %17 = vsyncpa [#allocation9], 0
    %18 = vsyncpa [#allocation12], 0
    %19 = vsyncpa [#allocation4], 0
    %s20 = scalar_lea.sflag [#allocation4], 1
    %21 = vsyncpa %s20, 0
    loop: start=0, step=1, limit=4
    $region2: #{block_forward.1} parent=1 // loop_pre_header
      _
    $region3: #{block_forward.1} parent=1 // loop_header
      %s23 = sphi 0, %s27
      %p24 = scmp.ge.s32.totalorder %s23, 4
      %s33 = sphi 0, %s35
      %s36 = sphi 0, %s33
      %s37 = sphi 0, %s36
      %s53 = sphi 0, %s37
      %s57 = sphi 0, %s57
      %s59 = sphi 0, %s57
      %s60 = sphi 0, %s59
      %s74 = sphi 0, %s60
      %s78 = sphi 0, %s78
      %s80 = sphi 0, %s78
      %s81 = sphi 0, %s80
      %s95 = sphi 0, %s81
      %s99 = sphi 0, %s99
      %s101 = sphi 0, %s99
      %s102 = sphi 0, %s101
      %s116 = sphi 0, %s102
      %s120 = sphi 0, %s120
      %s122 = sphi 0, %s120
      %s123 = sphi 0, %s122
      %s137 = sphi 0, %s123
      %s141 = sphi 0, %s141
      %s143 = sphi 0, %s141
      %s144 = sphi 0, %s143
      %s158 = sphi 0, %s144
      %s162 = sphi 0, %s162
      %s164 = sphi 0, %s162
      %s165 = sphi 0, %s164
      %s179 = sphi 0, %s165
      %s183 = sphi 0, %s183
      %s185 = sphi 0, %s183
      %s186 = sphi 0, %s185
      %s200 = sphi 0, %s186
      %s206 = sphi 0, %s208
      %s209 = sphi 0, %s206
      %s210 = sphi 0, %s209
      %s226 = sphi 0, %s210
    $region4: #{block_forward.1} parent=1 // loop_header_branch
      %26 = sbr.rel (%p24) target = $region8
    $region5: #{block_forward.1} parent=1 // loop_body
      %s28 = ssub.s32 %s23, 1
      %s29 = ssub.s32 %s23, 2
      %s30 = sadd.s32 %s23, 1
      %s31 = ssub.s32 %s23, %s30
      %p32 = scmp.eq.s32.totalorder %s31, 0
      %s34 = sadd.s32 %s33, 1
      %s35 = scalar_select %p32, %s33, %s34
      %p38 = pneg %p32
      %p39 = scmp.eq.s32.totalorder %s23, 1
      %p40 = por %p38, %p39
      %p41 = scmp.ne.s32.totalorder %s33, %s36
      %p42 = scmp.eq.s32.totalorder %s23, 0
      %p43 = por %p41, %p42
      %p44 = scmp.ne.s32.totalorder %s33, %s36
      %p45 = scmp.eq.s32.totalorder %s28, 1
      %p46 = por %p44, %p45
      %p47 = scmp.ne.s32.totalorder %s36, %s37
      %p48 = scmp.eq.s32.totalorder %s28, 0
      %p49 = por %p47, %p48
      %p50 = scmp.ne.s32.totalorder %s36, %s37
      %p51 = scmp.eq.s32.totalorder %s29, 1
      %p52 = por %p50, %p51
      %p54 = scmp.ne.s32.totalorder %s37, %s53
      %p55 = scmp.eq.s32.totalorder %s29, 0
      %p56 = por %p54, %p55
      %s58 = sadd.s32 %s57, 1
      %p61 = scmp.eq.s32.totalorder %s23, 1
      %p62 = scmp.ne.s32.totalorder %s57, %s59
      %p63 = scmp.eq.s32.totalorder %s23, 0
      %p64 = por %p62, %p63
      %p65 = scmp.ne.s32.totalorder %s57, %s59
      %p66 = scmp.eq.s32.totalorder %s28, 1
      %p67 = por %p65, %p66
      %p68 = scmp.ne.s32.totalorder %s59, %s60
      %p69 = scmp.eq.s32.totalorder %s28, 0
      %p70 = por %p68, %p69
      %p71 = scmp.ne.s32.totalorder %s59, %s60
      %p72 = scmp.eq.s32.totalorder %s29, 1
      %p73 = por %p71, %p72
      %p75 = scmp.ne.s32.totalorder %s60, %s74
      %p76 = scmp.eq.s32.totalorder %s29, 0
      %p77 = por %p75, %p76
      %s79 = sadd.s32 %s78, 1
      %p82 = scmp.eq.s32.totalorder %s23, 1
      %p83 = scmp.ne.s32.totalorder %s78, %s80
      %p84 = scmp.eq.s32.totalorder %s23, 0
      %p85 = por %p83, %p84
      %p86 = scmp.ne.s32.totalorder %s78, %s80
      %p87 = scmp.eq.s32.totalorder %s28, 1
      %p88 = por %p86, %p87
      %p89 = scmp.ne.s32.totalorder %s80, %s81
      %p90 = scmp.eq.s32.totalorder %s28, 0
      %p91 = por %p89, %p90
      %p92 = scmp.ne.s32.totalorder %s80, %s81
      %p93 = scmp.eq.s32.totalorder %s29, 1
      %p94 = por %p92, %p93
      %p96 = scmp.ne.s32.totalorder %s81, %s95
      %p97 = scmp.eq.s32.totalorder %s29, 0
      %p98 = por %p96, %p97
      %s100 = sadd.s32 %s99, 1
      %p103 = scmp.eq.s32.totalorder %s23, 1
      %p104 = scmp.ne.s32.totalorder %s99, %s101
      %p105 = scmp.eq.s32.totalorder %s23, 0
      %p106 = por %p104, %p105
      %p107 = scmp.ne.s32.totalorder %s99, %s101
      %p108 = scmp.eq.s32.totalorder %s28, 1
      %p109 = por %p107, %p108
      %p110 = scmp.ne.s32.totalorder %s101, %s102
      %p111 = scmp.eq.s32.totalorder %s28, 0
      %p112 = por %p110, %p111
      %p113 = scmp.ne.s32.totalorder %s101, %s102
      %p114 = scmp.eq.s32.totalorder %s29, 1
      %p115 = por %p113, %p114
      %p117 = scmp.ne.s32.totalorder %s102, %s116
      %p118 = scmp.eq.s32.totalorder %s29, 0
      %p119 = por %p117, %p118
      %s121 = sadd.s32 %s120, 1
      %p124 = scmp.eq.s32.totalorder %s23, 1
      %p125 = scmp.ne.s32.totalorder %s120, %s122
      %p126 = scmp.eq.s32.totalorder %s23, 0
      %p127 = por %p125, %p126
      %p128 = scmp.ne.s32.totalorder %s120, %s122
      %p129 = scmp.eq.s32.totalorder %s28, 1
      %p130 = por %p128, %p129
      %p131 = scmp.ne.s32.totalorder %s122, %s123
      %p132 = scmp.eq.s32.totalorder %s28, 0
      %p133 = por %p131, %p132
      %p134 = scmp.ne.s32.totalorder %s122, %s123
      %p135 = scmp.eq.s32.totalorder %s29, 1
      %p136 = por %p134, %p135
      %p138 = scmp.ne.s32.totalorder %s123, %s137
      %p139 = scmp.eq.s32.totalorder %s29, 0
      %p140 = por %p138, %p139
      %s142 = sadd.s32 %s141, 1
      %p145 = scmp.eq.s32.totalorder %s23, 1
      %p146 = scmp.ne.s32.totalorder %s141, %s143
      %p147 = scmp.eq.s32.totalorder %s23, 0
      %p148 = por %p146, %p147
      %p149 = scmp.ne.s32.totalorder %s141, %s143
      %p150 = scmp.eq.s32.totalorder %s28, 1
      %p151 = por %p149, %p150
      %p152 = scmp.ne.s32.totalorder %s143, %s144
      %p153 = scmp.eq.s32.totalorder %s28, 0
      %p154 = por %p152, %p153
      %p155 = scmp.ne.s32.totalorder %s143, %s144
      %p156 = scmp.eq.s32.totalorder %s29, 1
      %p157 = por %p155, %p156
      %p159 = scmp.ne.s32.totalorder %s144, %s158
      %p160 = scmp.eq.s32.totalorder %s29, 0
      %p161 = por %p159, %p160
      %s163 = sadd.s32 %s162, 1
      %p166 = scmp.eq.s32.totalorder %s23, 1
      %p167 = scmp.ne.s32.totalorder %s162, %s164
      %p168 = scmp.eq.s32.totalorder %s23, 0
      %p169 = por %p167, %p168
      %p170 = scmp.ne.s32.totalorder %s162, %s164
      %p171 = scmp.eq.s32.totalorder %s28, 1
      %p172 = por %p170, %p171
      %p173 = scmp.ne.s32.totalorder %s164, %s165
      %p174 = scmp.eq.s32.totalorder %s28, 0
      %p175 = por %p173, %p174
      %p176 = scmp.ne.s32.totalorder %s164, %s165
      %p177 = scmp.eq.s32.totalorder %s29, 1
      %p178 = por %p176, %p177
      %p180 = scmp.ne.s32.totalorder %s165, %s179
      %p181 = scmp.eq.s32.totalorder %s29, 0
      %p182 = por %p180, %p181
      %s184 = sadd.s32 %s183, 1
      %p187 = scmp.eq.s32.totalorder %s23, 1
      %p188 = scmp.ne.s32.totalorder %s183, %s185
      %p189 = scmp.eq.s32.totalorder %s23, 0
      %p190 = por %p188, %p189
      %p191 = scmp.ne.s32.totalorder %s183, %s185
      %p192 = scmp.eq.s32.totalorder %s28, 1
      %p193 = por %p191, %p192
      %p194 = scmp.ne.s32.totalorder %s185, %s186
      %p195 = scmp.eq.s32.totalorder %s28, 0
      %p196 = por %p194, %p195
      %p197 = scmp.ne.s32.totalorder %s185, %s186
      %p198 = scmp.eq.s32.totalorder %s29, 1
      %p199 = por %p197, %p198
      %p201 = scmp.ne.s32.totalorder %s186, %s200
      %p202 = scmp.eq.s32.totalorder %s29, 0
      %p203 = por %p201, %p202
      %s204 = ssub.s32 %s23, %s30
      %p205 = scmp.eq.s32.totalorder %s204, 0
      %s207 = sadd.s32 %s206, 1
      %s208 = scalar_select %p205, %s206, %s207
      %p211 = pneg %p205
      %p212 = scmp.eq.s32.totalorder %s23, 1
      %p213 = por %p211, %p212
      %p214 = scmp.ne.s32.totalorder %s206, %s209
      %p215 = scmp.eq.s32.totalorder %s23, 0
      %p216 = por %p214, %p215
      %p217 = scmp.ne.s32.totalorder %s206, %s209
      %p218 = scmp.eq.s32.totalorder %s28, 1
      %p219 = por %p217, %p218
      %p220 = scmp.ne.s32.totalorder %s209, %s210
      %p221 = scmp.eq.s32.totalorder %s28, 0
      %p222 = por %p220, %p221
      %p223 = scmp.ne.s32.totalorder %s209, %s210
      %p224 = scmp.eq.s32.totalorder %s29, 1
      %p225 = por %p223, %p224
      %p227 = scmp.ne.s32.totalorder %s210, %s226
      %p228 = scmp.eq.s32.totalorder %s29, 0
      %p229 = por %p227, %p228
      %p230 = scmp.le.s32.totalorder 1, %s23
      %p231 = scmp.lt.s32.totalorder %s23, 3
      %p232 = pnand %p230, %p231
      %p233 = pneg %p232
      // Predicated region
      $region9: #{block_forward.1} parent=5 // pred_check
        _
      $region10: #{block_forward.1} parent=5 // pred_check_branch
        %235 = sbr.rel (%p232) target = $region12
      $region11: #{block_forward.1} parent=5 // pred_region
        %s236 = ssub.s32 %s23, 1
        // Predicated region
        $region13: #{block_forward.1} parent=11 // pred_check
          %p237 = pneg %p70
        $region14: #{block_forward.1} parent=11 // pred_check_branch
          %239 = sbr.rel (%p237) target = $region16
        $region15: #{block_forward.1} parent=11 // pred_region
          _
        $region16: #{block_forward.1} parent=11 // pred_fallthru
          _
        // Predicated region
        $region17: #{block_forward.1} parent=11 // pred_check
          %p240 = pneg %p91
        $region18: #{block_forward.1} parent=11 // pred_check_branch
          %242 = sbr.rel (%p240) target = $region20
        $region19: #{block_forward.1} parent=11 // pred_region
          %s244 = ssub.s32 4096, 4096
          %245 = vsyncadd [#allocation6], %s244
          %s246 = sshll.u32 [#allocation5], 4
          %s247 = int_to_ptr.vmem [resolvable:$true] %s246
          %252 = dma.hbm_to_vmem [thread:$0]  %s2, 4096, %s247, [#allocation6], 256, 256, 16
        $region20: #{block_forward.1} parent=11 // pred_fallthru
          _
        // Predicated region
        $region21: #{block_forward.1} parent=11 // pred_check
          %p253 = pneg %p112
        $region22: #{block_forward.1} parent=11 // pred_check_branch
          %255 = sbr.rel (%p253) target = $region24
        $region23: #{block_forward.1} parent=11 // pred_region
          %s257 = ssub.s32 4096, 4096
          %258 = vsyncadd [#allocation6], %s257
          %s259 = sshll.u32 [#allocation7], 4
          %s260 = int_to_ptr.vmem [resolvable:$true] %s259
          %265 = dma.hbm_to_vmem [thread:$0]  %s3, 4096, %s260, [#allocation6], 256, 256, 16
        $region24: #{block_forward.1} parent=11 // pred_fallthru
          _
        // Predicated region
        $region25: #{block_forward.1} parent=11 // pred_check
          %p266 = pneg %p133
        $region26: #{block_forward.1} parent=11 // pred_check_branch
          %268 = sbr.rel (%p266) target = $region28
        $region27: #{block_forward.1} parent=11 // pred_region
          %s270 = ssub.s32 4096, 4096
          %271 = vsyncadd [#allocation9], %s270
          %s272 = sshll.u32 [#allocation8], 4
          %s273 = int_to_ptr.vmem [resolvable:$true] %s272
          %278 = dma.hbm_to_vmem [thread:$0]  %s4, 4096, %s273, [#allocation9], 256, 256, 16
        $region28: #{block_forward.1} parent=11 // pred_fallthru
          _
        // Predicated region
        $region29: #{block_forward.1} parent=11 // pred_check
          %p279 = pneg %p154
        $region30: #{block_forward.1} parent=11 // pred_check_branch
          %281 = sbr.rel (%p279) target = $region32
        $region31: #{block_forward.1} parent=11 // pred_region
          %s283 = ssub.s32 4096, 4096
          %284 = vsyncadd [#allocation9], %s283
          %s285 = sshll.u32 [#allocation10], 4
          %s286 = int_to_ptr.vmem [resolvable:$true] %s285
          %291 = dma.hbm_to_vmem [thread:$0]  %s5, 4096, %s286, [#allocation9], 64, 64, 4
        $region32: #{block_forward.1} parent=11 // pred_fallthru
          _
        // Predicated region
        $region33: #{block_forward.1} parent=11 // pred_check
          %p292 = pneg %p175
        $region34: #{block_forward.1} parent=11 // pred_check_branch
          %294 = sbr.rel (%p292) target = $region36
        $region35: #{block_forward.1} parent=11 // pred_region
          %s296 = ssub.s32 2048, 2048
          %297 = vsyncadd [#allocation12], %s296
          %s298 = sshll.u32 [#allocation11], 4
          %s299 = int_to_ptr.vmem [resolvable:$true] %s298
          %304 = dma.hbm_to_vmem [thread:$0]  %s6, 2048, %s299, [#allocation12], 128, 128, 8
        $region36: #{block_forward.1} parent=11 // pred_fallthru
          _
        // Predicated region
        $region37: #{block_forward.1} parent=11 // pred_check
          %p305 = pneg %p196
        $region38: #{block_forward.1} parent=11 // pred_check_branch
          %307 = sbr.rel (%p305) target = $region40
        $region39: #{block_forward.1} parent=11 // pred_region
          %s309 = ssub.s32 1024, 1024
          %310 = vsyncadd [#allocation12], %s309
          %s311 = sshll.u32 [#allocation13], 4
          %s312 = int_to_ptr.vmem [resolvable:$true] %s311
          %317 = dma.hbm_to_vmem [thread:$0]  %s7, 1024, %s312, [#allocation12], 64, 64, 4
        $region40: #{block_forward.1} parent=11 // pred_fallthru
          _
      $region12: #{block_forward.1} parent=5 // pred_fallthru
        _
      %p318 = scmp.lt.s32.totalorder %s23, 2
      // Predicated region
      $region41: #{block_forward.1} parent=5 // pred_check
        %p319 = pneg %p318
      $region42: #{block_forward.1} parent=5 // pred_check_branch
        %321 = sbr.rel (%p319) target = $region44
      $region43: #{block_forward.1} parent=5 // pred_region
        // Predicated region
        $region45: #{block_forward.1} parent=43 // pred_check
          %p322 = pneg %p43
        $region46: #{block_forward.1} parent=43 // pred_check_branch
          %324 = sbr.rel (%p322) target = $region48
        $region47: #{block_forward.1} parent=43 // pred_region
          %s325 = sand.u32 %s33, 1
          %s326 = scalar_lea.sflag [#allocation3], %s325
          %s327 = sand.u32 %s33, 1
          %s328 = smul.addr %s327, 8
          %s329 = scalar_lea.vmem [#allocation2], %s328
          %s331 = ssub.s32 128, 128
          %332 = vsyncadd %s326, %s331
          %s333 = smul.addr %s23, 128
          %s334 = scalar_lea.hbm %s0, %s333
          %s336 = sshll.u32 %s329, 4
          %s337 = int_to_ptr.vmem [resolvable:$true] %s336
          %339 = dma.hbm_to_vmem [thread:$0]  %s334, 128, %s337, %s326
        $region48: #{block_forward.1} parent=43 // pred_fallthru
          _
      $region44: #{block_forward.1} parent=5 // pred_fallthru
        _
      %p340 = scmp.le.s32.totalorder 1, %s23
      %p341 = scmp.lt.s32.totalorder %s23, 3
      %p342 = pnand %p340, %p341
      %p343 = pneg %p342
      // Predicated region
      $region49: #{block_forward.1} parent=5 // pred_check
        _
      $region50: #{block_forward.1} parent=5 // pred_check_branch
        %345 = sbr.rel (%p342) target = $region52
      $region51: #{block_forward.1} parent=5 // pred_region
        %s346 = ssub.s32 %s23, 1
        %s347 = sand.u32 %s36, 1
        %s348 = scalar_lea.sflag [#allocation3], %s347
        %s349 = sand.u32 %s36, 1
        %s350 = smul.addr %s349, 8
        %s351 = scalar_lea.vmem [#allocation2], %s350
        // Predicated region
        $region53: #{block_forward.1} parent=51 // pred_check
          %p352 = pneg %p49
        $region54: #{block_forward.1} parent=51 // pred_check_branch
          %354 = sbr.rel (%p352) target = $region56
        $region55: #{block_forward.1} parent=51 // pred_region
          %355 = dma.done %s348, 128
        $region56: #{block_forward.1} parent=51 // pred_fallthru
          _
        // Predicated region
        $region57: #{block_forward.1} parent=51 // pred_check
          %p356 = pneg %p91
        $region58: #{block_forward.1} parent=51 // pred_check_branch
          %358 = sbr.rel (%p356) target = $region60
        $region59: #{block_forward.1} parent=51 // pred_region
          %359 = dma.done [#allocation6], 4096
        $region60: #{block_forward.1} parent=51 // pred_fallthru
          _
        // Predicated region
        $region61: #{block_forward.1} parent=51 // pred_check
          %p360 = pneg %p112
        $region62: #{block_forward.1} parent=51 // pred_check_branch
          %362 = sbr.rel (%p360) target = $region64
        $region63: #{block_forward.1} parent=51 // pred_region
          %363 = dma.done [#allocation6], 4096
        $region64: #{block_forward.1} parent=51 // pred_fallthru
          _
        // Predicated region
        $region65: #{block_forward.1} parent=51 // pred_check
          %p364 = pneg %p133
        $region66: #{block_forward.1} parent=51 // pred_check_branch
          %366 = sbr.rel (%p364) target = $region68
        $region67: #{block_forward.1} parent=51 // pred_region
          %367 = dma.done [#allocation9], 4096
        $region68: #{block_forward.1} parent=51 // pred_fallthru
          _
        // Predicated region
        $region69: #{block_forward.1} parent=51 // pred_check
          %p368 = pneg %p154
        $region70: #{block_forward.1} parent=51 // pred_check_branch
          %370 = sbr.rel (%p368) target = $region72
        $region71: #{block_forward.1} parent=51 // pred_region
          %371 = dma.done [#allocation9], 4096
        $region72: #{block_forward.1} parent=51 // pred_fallthru
          _
        // Predicated region
        $region73: #{block_forward.1} parent=51 // pred_check
          %p372 = pneg %p175
        $region74: #{block_forward.1} parent=51 // pred_check_branch
          %374 = sbr.rel (%p372) target = $region76
        $region75: #{block_forward.1} parent=51 // pred_region
          %375 = dma.done [#allocation12], 2048
        $region76: #{block_forward.1} parent=51 // pred_fallthru
          _
        // Predicated region
        $region77: #{block_forward.1} parent=51 // pred_check
          %p376 = pneg %p196
        $region78: #{block_forward.1} parent=51 // pred_check_branch
          %378 = sbr.rel (%p376) target = $region80
        $region79: #{block_forward.1} parent=51 // pred_region
          %379 = dma.done [#allocation12], 1024
        $region80: #{block_forward.1} parent=51 // pred_fallthru
          _
        %s380 = sand.u32 %s36, 1
        %s381 = scalar_lea.sflag [#allocation3], %s380
        %s382 = sand.u32 %s36, 1
        %s383 = smul.addr %s382, 8
        %s384 = scalar_lea.vmem [#allocation2], %s383
        %p385 = pneg %p49
        %p386 = pneg %p46
        %p387 = pneg %p70
        %p388 = pneg %p67
        %p389 = pneg %p91
        %p390 = pneg %p88
        %p391 = pneg %p112
        %p392 = pneg %p109
        %p393 = pneg %p133
        %p394 = pneg %p130
        %p395 = pneg %p154
        %p396 = pneg %p151
        %p397 = pneg %p175
        %p398 = pneg %p172
        %p399 = pneg %p196
        %p400 = pneg %p193
        %p401 = pneg %p222
        %p402 = pneg %p219
        %s403 = sand.u32 %s209, 1
        %s404 = scalar_lea.sflag [#allocation4], %s403
        %s405 = sand.u32 %s209, 1
        %s406 = smul.addr %s405, 8
        %s407 = scalar_lea.vmem [#allocation14], %s406
        %v409 = vld [vmem:[%s351] sm:$0xff]
        %v410 = vld [vmem:[%s1] sm:$0x1]
        %v411 = vmul.f32 %v409, %v409
        %412 = vadd.xlane.f32.xlu0 %v411
        %v413 = vpop.xlane.xlu0 %412
        %v414 = vmul.f32 %v413, 0.03125
        %v415 = vadd.f32 %v414, 1e-06
        %v416 = vrsqrt.pop %v415
        %v417 = vmul.f32 %v409, %v416
        %v419 = vlaneseq
        %v420 = vshrl.u32 %v419, 7
        %v421 = vsub.s32 0, %v420
        %v422 = vrot.slane %v410, %v421
        %v424 = vmul.f32 %v417, %v422
        %v425 = vpack.c.bf16 %v424, %v424
        %v426 = vld [vmem:[#allocation5] sm:$0xff]
        %v427 = vld [vmem:[#allocation5 + $0x8] sm:$0xff]
        %v428 = vld [vmem:[#allocation5 + $0x10] sm:$0xff]
        %v429 = vld [vmem:[#allocation5 + $0x18] sm:$0xff]
        %v430 = vld [vmem:[#allocation5 + $0x20] sm:$0xff]
        %v431 = vld [vmem:[#allocation5 + $0x28] sm:$0xff]
        %v432 = vld [vmem:[#allocation5 + $0x30] sm:$0xff]
        %v433 = vld [vmem:[#allocation5 + $0x38] sm:$0xff]
        %v434 = vld [vmem:[#allocation5 + $0x40] sm:$0xff]
        %v435 = vld [vmem:[#allocation5 + $0x48] sm:$0xff]
        %v436 = vld [vmem:[#allocation5 + $0x50] sm:$0xff]
        %v437 = vld [vmem:[#allocation5 + $0x58] sm:$0xff]
        %v438 = vld [vmem:[#allocation5 + $0x60] sm:$0xff]
        %v439 = vld [vmem:[#allocation5 + $0x68] sm:$0xff]
        %v440 = vld [vmem:[#allocation5 + $0x70] sm:$0xff]
        %v441 = vld [vmem:[#allocation5 + $0x78] sm:$0xff]
        %v442 = vld [vmem:[#allocation5 + $0x80] sm:$0xff]
        %v443 = vld [vmem:[#allocation5 + $0x88] sm:$0xff]
        %v444 = vld [vmem:[#allocation5 + $0x90] sm:$0xff]
        %v445 = vld [vmem:[#allocation5 + $0x98] sm:$0xff]
        %v446 = vld [vmem:[#allocation5 + $0xa0] sm:$0xff]
        %v447 = vld [vmem:[#allocation5 + $0xa8] sm:$0xff]
        %v448 = vld [vmem:[#allocation5 + $0xb0] sm:$0xff]
        %v449 = vld [vmem:[#allocation5 + $0xb8] sm:$0xff]
        %v450 = vld [vmem:[#allocation5 + $0xc0] sm:$0xff]
        %v451 = vld [vmem:[#allocation5 + $0xc8] sm:$0xff]
        %v452 = vld [vmem:[#allocation5 + $0xd0] sm:$0xff]
        %v453 = vld [vmem:[#allocation5 + $0xd8] sm:$0xff]
        %v454 = vld [vmem:[#allocation5 + $0xe0] sm:$0xff]
        %v455 = vld [vmem:[#allocation5 + $0xe8] sm:$0xff]
        %v456 = vld [vmem:[#allocation5 + $0xf0] sm:$0xff]
        %v457 = vld [vmem:[#allocation5 + $0xf8] sm:$0xff]
        %v490 = vunpack.c.l.b16 %v426
        %v491 = vunpack.c.h.b16 %v426
        %v492 = vunpack.c.l.b16 %v427
        %v493 = vunpack.c.h.b16 %v427
        %v494 = vunpack.c.l.b16 %v428
        %v495 = vunpack.c.h.b16 %v428
        %v496 = vunpack.c.l.b16 %v429
        %v497 = vunpack.c.h.b16 %v429
        %v498 = vunpack.c.l.b16 %v430
        %v499 = vunpack.c.h.b16 %v430
        %v500 = vunpack.c.l.b16 %v431
        %v501 = vunpack.c.h.b16 %v431
        %v502 = vunpack.c.l.b16 %v432
        %v503 = vunpack.c.h.b16 %v432
        %v504 = vunpack.c.l.b16 %v433
        %v505 = vunpack.c.h.b16 %v433
        %v506 = vunpack.c.l.b16 %v434
        %v507 = vunpack.c.h.b16 %v434
        %v508 = vunpack.c.l.b16 %v435
        %v509 = vunpack.c.h.b16 %v435
        %v510 = vunpack.c.l.b16 %v436
        %v511 = vunpack.c.h.b16 %v436
        %v512 = vunpack.c.l.b16 %v437
        %v513 = vunpack.c.h.b16 %v437
        %v514 = vunpack.c.l.b16 %v438
        %v515 = vunpack.c.h.b16 %v438
        %v516 = vunpack.c.l.b16 %v439
        %v517 = vunpack.c.h.b16 %v439
        %v518 = vunpack.c.l.b16 %v440
        %v519 = vunpack.c.h.b16 %v440
        %v520 = vunpack.c.l.b16 %v441
        %v521 = vunpack.c.h.b16 %v441
        %v522 = vunpack.c.l.b16 %v442
        %v523 = vunpack.c.h.b16 %v442
        %v524 = vunpack.c.l.b16 %v443
        %v525 = vunpack.c.h.b16 %v443
        %v526 = vunpack.c.l.b16 %v444
        %v527 = vunpack.c.h.b16 %v444
        %v528 = vunpack.c.l.b16 %v445
        %v529 = vunpack.c.h.b16 %v445
        %v530 = vunpack.c.l.b16 %v446
        %v531 = vunpack.c.h.b16 %v446
        %v532 = vunpack.c.l.b16 %v447
        %v533 = vunpack.c.h.b16 %v447
        %v534 = vunpack.c.l.b16 %v448
        %v535 = vunpack.c.h.b16 %v448
        %v536 = vunpack.c.l.b16 %v449
        %v537 = vunpack.c.h.b16 %v449
        %v538 = vunpack.c.l.b16 %v450
        %v539 = vunpack.c.h.b16 %v450
        %v540 = vunpack.c.l.b16 %v451
        %v541 = vunpack.c.h.b16 %v451
        %v542 = vunpack.c.l.b16 %v452
        %v543 = vunpack.c.h.b16 %v452
        %v544 = vunpack.c.l.b16 %v453
        %v545 = vunpack.c.h.b16 %v453
        %v546 = vunpack.c.l.b16 %v454
        %v547 = vunpack.c.h.b16 %v454
        %v548 = vunpack.c.l.b16 %v455
        %v549 = vunpack.c.h.b16 %v455
        %v550 = vunpack.c.l.b16 %v456
        %v551 = vunpack.c.h.b16 %v456
        %v552 = vunpack.c.l.b16 %v457
        %v553 = vunpack.c.h.b16 %v457
        %v554 = vpack.c.b16 %v494, %v490
        %v555 = vpack.c.b16 %v495, %v491
        %v556 = vpack.c.b16 %v496, %v492
        %v557 = vpack.c.b16 %v497, %v493
        %v558 = vpack.c.b16 %v502, %v498
        %v559 = vpack.c.b16 %v503, %v499
        %v560 = vpack.c.b16 %v504, %v500
        %v561 = vpack.c.b16 %v505, %v501
        %v562 = vpack.c.b16 %v510, %v506
        %v563 = vpack.c.b16 %v511, %v507
        %v564 = vpack.c.b16 %v512, %v508
        %v565 = vpack.c.b16 %v513, %v509
        %v566 = vpack.c.b16 %v518, %v514
        %v567 = vpack.c.b16 %v519, %v515
        %v568 = vpack.c.b16 %v520, %v516
        %v569 = vpack.c.b16 %v521, %v517
        %v570 = vpack.c.b16 %v526, %v522
        %v571 = vpack.c.b16 %v527, %v523
        %v572 = vpack.c.b16 %v528, %v524
        %v573 = vpack.c.b16 %v529, %v525
        %v574 = vpack.c.b16 %v534, %v530
        %v575 = vpack.c.b16 %v535, %v531
        %v576 = vpack.c.b16 %v536, %v532
        %v577 = vpack.c.b16 %v537, %v533
        %v578 = vpack.c.b16 %v542, %v538
        %v579 = vpack.c.b16 %v543, %v539
        %v580 = vpack.c.b16 %v544, %v540
        %v581 = vpack.c.b16 %v545, %v541
        %v582 = vpack.c.b16 %v550, %v546
        %v583 = vpack.c.b16 %v551, %v547
        %v584 = vpack.c.b16 %v552, %v548
        %v585 = vpack.c.b16 %v553, %v549
        %618 = vmatprep.subr.bf16.mxu0 %v583
        %619 = vmatpush1.bf16.msra.mxu0 %v582
        %620 = vmatprep.subr.bf16.mxu0 %v579
        %621 = vmatpush1.bf16.msra.mxu0 %v578
        %622 = vmatprep.subr.bf16.mxu0 %v575
        %623 = vmatpush1.bf16.msra.mxu0 %v574
        %624 = vmatprep.subr.bf16.mxu0 %v571
        %625 = vmatpush1.bf16.msra.mxu0 %v570
        %626 = vmatprep.subr.bf16.mxu0 %v567
        %627 = vmatpush1.bf16.msra.mxu0 %v566
        %628 = vmatprep.subr.bf16.mxu0 %v563
        %629 = vmatpush1.bf16.msra.mxu0 %v562
        %630 = vmatprep.subr.bf16.mxu0 %v559
        %631 = vmatpush1.bf16.msra.mxu0 %v558
        %632 = vmatprep.subr.bf16.mxu0 %v555
        %633 = vmatpush1.bf16.msra.mxu0 %v554
        %634 = vmatprep.subr.bf16.mxu0 0
        %635 = vmatpush2.bf16.msra.mxu0 0
        %636 = vmatprep.subr.bf16.mxu0 0
        %637 = vmatpush2.bf16.msra.mxu0 0
        %638 = vmatprep.subr.bf16.mxu0 0
        %639 = vmatpush2.bf16.msra.mxu0 0
        %640 = vmatprep.subr.bf16.mxu0 0
        %641 = vmatpush2.bf16.msra.mxu0 0
        %642 = vmatprep.subr.bf16.mxu0 0
        %643 = vmatpush2.bf16.msra.mxu0 0
        %644 = vmatprep.subr.bf16.mxu0 0
        %645 = vmatpush2.bf16.msra.mxu0 0
        %646 = vmatprep.subr.bf16.mxu0 0
        %647 = vmatpush2.bf16.msra.mxu0 0
        %648 = vmatprep.subr.bf16.mxu0 0
        %649 = vmatpush2.bf16.msra.mxu0 0
        %650 = vmatprep.mubr.bf16.mxu0 0
        %651 = vmatmul.mubr.bf16.gmra.mxu0 %v425
        %v652 = vpop.f32.mrf.mxu0
        %v653 = vadd.f32 0.0, %v652
        %v654 = vpop.f32.mrf.mxu0
        %v655 = vadd.f32 0.0, %v654
        %v656 = vpop.f32.mrf.mxu0
        %v657 = vpop.f32.mrf.mxu0
        %658 = vdwg.mxu0
        %659 = vmatprep.subr.bf16.mxu0 %v585
        %660 = vmatpush1.bf16.msra.mxu0 %v584
        %661 = vmatprep.subr.bf16.mxu0 %v581
        %662 = vmatpush1.bf16.msra.mxu0 %v580
        %663 = vmatprep.subr.bf16.mxu0 %v577
        %664 = vmatpush1.bf16.msra.mxu0 %v576
        %665 = vmatprep.subr.bf16.mxu0 %v573
        %666 = vmatpush1.bf16.msra.mxu0 %v572
        %667 = vmatprep.subr.bf16.mxu0 %v569
        %668 = vmatpush1.bf16.msra.mxu0 %v568
        %669 = vmatprep.subr.bf16.mxu0 %v565
        %670 = vmatpush1.bf16.msra.mxu0 %v564
        %671 = vmatprep.subr.bf16.mxu0 %v561
        %672 = vmatpush1.bf16.msra.mxu0 %v560
        %673 = vmatprep.subr.bf16.mxu0 %v557
        %674 = vmatpush1.bf16.msra.mxu0 %v556
        %675 = vmatprep.subr.bf16.mxu0 0
        %676 = vmatpush2.bf16.msra.mxu0 0
        %677 = vmatprep.subr.bf16.mxu0 0
        %678 = vmatpush2.bf16.msra.mxu0 0
        %679 = vmatprep.subr.bf16.mxu0 0
        %680 = vmatpush2.bf16.msra.mxu0 0
        %681 = vmatprep.subr.bf16.mxu0 0
        %682 = vmatpush2.bf16.msra.mxu0 0
        %683 = vmatprep.subr.bf16.mxu0 0
        %684 = vmatpush2.bf16.msra.mxu0 0
        %685 = vmatprep.subr.bf16.mxu0 0
        %686 = vmatpush2.bf16.msra.mxu0 0
        %687 = vmatprep.subr.bf16.mxu0 0
        %688 = vmatpush2.bf16.msra.mxu0 0
        %689 = vmatprep.subr.bf16.mxu0 0
        %690 = vmatpush2.bf16.msra.mxu0 0
        %691 = vmatprep.mubr.bf16.mxu0 0
        %692 = vmatmul.mubr.bf16.gmra.mxu0 %v425
        %v693 = vpop.f32.mrf.mxu0
        %v694 = vadd.f32 0.0, %v693
        %v695 = vpop.f32.mrf.mxu0
        %v696 = vadd.f32 0.0, %v695
        %v697 = vpop.f32.mrf.mxu0
        %v698 = vpop.f32.mrf.mxu0
        %699 = vdwg.mxu0
        %v700 = vld [vmem:[#allocation7] sm:$0xff]
        %v701 = vld [vmem:[#allocation7 + $0x8] sm:$0xff]
        %v702 = vld [vmem:[#allocation7 + $0x10] sm:$0xff]
        %v703 = vld [vmem:[#allocation7 + $0x18] sm:$0xff]
        %v704 = vld [vmem:[#allocation7 + $0x20] sm:$0xff]
        %v705 = vld [vmem:[#allocation7 + $0x28] sm:$0xff]
        %v706 = vld [vmem:[#allocation7 + $0x30] sm:$0xff]
        %v707 = vld [vmem:[#allocation7 + $0x38] sm:$0xff]
        %v708 = vld [vmem:[#allocation7 + $0x40] sm:$0xff]
        %v709 = vld [vmem:[#allocation7 + $0x48] sm:$0xff]
        %v710 = vld [vmem:[#allocation7 + $0x50] sm:$0xff]
        %v711 = vld [vmem:[#allocation7 + $0x58] sm:$0xff]
        %v712 = vld [vmem:[#allocation7 + $0x60] sm:$0xff]
        %v713 = vld [vmem:[#allocation7 + $0x68] sm:$0xff]
        %v714 = vld [vmem:[#allocation7 + $0x70] sm:$0xff]
        %v715 = vld [vmem:[#allocation7 + $0x78] sm:$0xff]
        %v716 = vld [vmem:[#allocation7 + $0x80] sm:$0xff]
        %v717 = vld [vmem:[#allocation7 + $0x88] sm:$0xff]
        %v718 = vld [vmem:[#allocation7 + $0x90] sm:$0xff]
        %v719 = vld [vmem:[#allocation7 + $0x98] sm:$0xff]
        %v720 = vld [vmem:[#allocation7 + $0xa0] sm:$0xff]
        %v721 = vld [vmem:[#allocation7 + $0xa8] sm:$0xff]
        %v722 = vld [vmem:[#allocation7 + $0xb0] sm:$0xff]
        %v723 = vld [vmem:[#allocation7 + $0xb8] sm:$0xff]
        %v724 = vld [vmem:[#allocation7 + $0xc0] sm:$0xff]
        %v725 = vld [vmem:[#allocation7 + $0xc8] sm:$0xff]
        %v726 = vld [vmem:[#allocation7 + $0xd0] sm:$0xff]
        %v727 = vld [vmem:[#allocation7 + $0xd8] sm:$0xff]
        %v728 = vld [vmem:[#allocation7 + $0xe0] sm:$0xff]
        %v729 = vld [vmem:[#allocation7 + $0xe8] sm:$0xff]
        %v730 = vld [vmem:[#allocation7 + $0xf0] sm:$0xff]
        %v731 = vld [vmem:[#allocation7 + $0xf8] sm:$0xff]
        %v764 = vunpack.c.l.b16 %v700
        %v765 = vunpack.c.h.b16 %v700
        %v766 = vunpack.c.l.b16 %v701
        %v767 = vunpack.c.h.b16 %v701
        %v768 = vunpack.c.l.b16 %v702
        %v769 = vunpack.c.h.b16 %v702
        %v770 = vunpack.c.l.b16 %v703
        %v771 = vunpack.c.h.b16 %v703
        %v772 = vunpack.c.l.b16 %v704
        %v773 = vunpack.c.h.b16 %v704
        %v774 = vunpack.c.l.b16 %v705
        %v775 = vunpack.c.h.b16 %v705
        %v776 = vunpack.c.l.b16 %v706
        %v777 = vunpack.c.h.b16 %v706
        %v778 = vunpack.c.l.b16 %v707
        %v779 = vunpack.c.h.b16 %v707
        %v780 = vunpack.c.l.b16 %v708
        %v781 = vunpack.c.h.b16 %v708
        %v782 = vunpack.c.l.b16 %v709
        %v783 = vunpack.c.h.b16 %v709
        %v784 = vunpack.c.l.b16 %v710
        %v785 = vunpack.c.h.b16 %v710
        %v786 = vunpack.c.l.b16 %v711
        %v787 = vunpack.c.h.b16 %v711
        %v788 = vunpack.c.l.b16 %v712
        %v789 = vunpack.c.h.b16 %v712
        %v790 = vunpack.c.l.b16 %v713
        %v791 = vunpack.c.h.b16 %v713
        %v792 = vunpack.c.l.b16 %v714
        %v793 = vunpack.c.h.b16 %v714
        %v794 = vunpack.c.l.b16 %v715
        %v795 = vunpack.c.h.b16 %v715
        %v796 = vunpack.c.l.b16 %v716
        %v797 = vunpack.c.h.b16 %v716
        %v798 = vunpack.c.l.b16 %v717
        %v799 = vunpack.c.h.b16 %v717
        %v800 = vunpack.c.l.b16 %v718
        %v801 = vunpack.c.h.b16 %v718
        %v802 = vunpack.c.l.b16 %v719
        %v803 = vunpack.c.h.b16 %v719
        %v804 = vunpack.c.l.b16 %v720
        %v805 = vunpack.c.h.b16 %v720
        %v806 = vunpack.c.l.b16 %v721
        %v807 = vunpack.c.h.b16 %v721
        %v808 = vunpack.c.l.b16 %v722
        %v809 = vunpack.c.h.b16 %v722
        %v810 = vunpack.c.l.b16 %v723
        %v811 = vunpack.c.h.b16 %v723
        %v812 = vunpack.c.l.b16 %v724
        %v813 = vunpack.c.h.b16 %v724
        %v814 = vunpack.c.l.b16 %v725
        %v815 = vunpack.c.h.b16 %v725
        %v816 = vunpack.c.l.b16 %v726
        %v817 = vunpack.c.h.b16 %v726
        %v818 = vunpack.c.l.b16 %v727
        %v819 = vunpack.c.h.b16 %v727
        %v820 = vunpack.c.l.b16 %v728
        %v821 = vunpack.c.h.b16 %v728
        %v822 = vunpack.c.l.b16 %v729
        %v823 = vunpack.c.h.b16 %v729
        %v824 = vunpack.c.l.b16 %v730
        %v825 = vunpack.c.h.b16 %v730
        %v826 = vunpack.c.l.b16 %v731
        %v827 = vunpack.c.h.b16 %v731
        %v828 = vpack.c.b16 %v768, %v764
        %v829 = vpack.c.b16 %v769, %v765
        %v830 = vpack.c.b16 %v770, %v766
        %v831 = vpack.c.b16 %v771, %v767
        %v832 = vpack.c.b16 %v776, %v772
        %v833 = vpack.c.b16 %v777, %v773
        %v834 = vpack.c.b16 %v778, %v774
        %v835 = vpack.c.b16 %v779, %v775
        %v836 = vpack.c.b16 %v784, %v780
        %v837 = vpack.c.b16 %v785, %v781
        %v838 = vpack.c.b16 %v786, %v782
        %v839 = vpack.c.b16 %v787, %v783
        %v840 = vpack.c.b16 %v792, %v788
        %v841 = vpack.c.b16 %v793, %v789
        %v842 = vpack.c.b16 %v794, %v790
        %v843 = vpack.c.b16 %v795, %v791
        %v844 = vpack.c.b16 %v800, %v796
        %v845 = vpack.c.b16 %v801, %v797
        %v846 = vpack.c.b16 %v802, %v798
        %v847 = vpack.c.b16 %v803, %v799
        %v848 = vpack.c.b16 %v808, %v804
        %v849 = vpack.c.b16 %v809, %v805
        %v850 = vpack.c.b16 %v810, %v806
        %v851 = vpack.c.b16 %v811, %v807
        %v852 = vpack.c.b16 %v816, %v812
        %v853 = vpack.c.b16 %v817, %v813
        %v854 = vpack.c.b16 %v818, %v814
        %v855 = vpack.c.b16 %v819, %v815
        %v856 = vpack.c.b16 %v824, %v820
        %v857 = vpack.c.b16 %v825, %v821
        %v858 = vpack.c.b16 %v826, %v822
        %v859 = vpack.c.b16 %v827, %v823
        %892 = vmatprep.subr.bf16.mxu0 %v857
        %893 = vmatpush1.bf16.msra.mxu0 %v856
        %894 = vmatprep.subr.bf16.mxu0 %v853
        %895 = vmatpush1.bf16.msra.mxu0 %v852
        %896 = vmatprep.subr.bf16.mxu0 %v849
        %897 = vmatpush1.bf16.msra.mxu0 %v848
        %898 = vmatprep.subr.bf16.mxu0 %v845
        %899 = vmatpush1.bf16.msra.mxu0 %v844
        %900 = vmatprep.subr.bf16.mxu0 %v841
        %901 = vmatpush1.bf16.msra.mxu0 %v840
        %902 = vmatprep.subr.bf16.mxu0 %v837
        %903 = vmatpush1.bf16.msra.mxu0 %v836
        %904 = vmatprep.subr.bf16.mxu0 %v833
        %905 = vmatpush1.bf16.msra.mxu0 %v832
        %906 = vmatprep.subr.bf16.mxu0 %v829
        %907 = vmatpush1.bf16.msra.mxu0 %v828
        %908 = vmatprep.subr.bf16.mxu0 0
        %909 = vmatpush2.bf16.msra.mxu0 0
        %910 = vmatprep.subr.bf16.mxu0 0
        %911 = vmatpush2.bf16.msra.mxu0 0
        %912 = vmatprep.subr.bf16.mxu0 0
        %913 = vmatpush2.bf16.msra.mxu0 0
        %914 = vmatprep.subr.bf16.mxu0 0
        %915 = vmatpush2.bf16.msra.mxu0 0
        %916 = vmatprep.subr.bf16.mxu0 0
        %917 = vmatpush2.bf16.msra.mxu0 0
        %918 = vmatprep.subr.bf16.mxu0 0
        %919 = vmatpush2.bf16.msra.mxu0 0
        %920 = vmatprep.subr.bf16.mxu0 0
        %921 = vmatpush2.bf16.msra.mxu0 0
        %922 = vmatprep.subr.bf16.mxu0 0
        %923 = vmatpush2.bf16.msra.mxu0 0
        %924 = vmatprep.mubr.bf16.mxu0 0
        %925 = vmatmul.mubr.bf16.gmra.mxu0 %v425
        %v926 = vpop.f32.mrf.mxu0
        %v927 = vadd.f32 0.0, %v926
        %v928 = vpop.f32.mrf.mxu0
        %v929 = vadd.f32 0.0, %v928
        %v930 = vpop.f32.mrf.mxu0
        %v931 = vpop.f32.mrf.mxu0
        %932 = vdwg.mxu0
        %933 = vmatprep.subr.bf16.mxu0 %v859
        %934 = vmatpush1.bf16.msra.mxu0 %v858
        %935 = vmatprep.subr.bf16.mxu0 %v855
        %936 = vmatpush1.bf16.msra.mxu0 %v854
        %937 = vmatprep.subr.bf16.mxu0 %v851
        %938 = vmatpush1.bf16.msra.mxu0 %v850
        %939 = vmatprep.subr.bf16.mxu0 %v847
        %940 = vmatpush1.bf16.msra.mxu0 %v846
        %941 = vmatprep.subr.bf16.mxu0 %v843
        %942 = vmatpush1.bf16.msra.mxu0 %v842
        %943 = vmatprep.subr.bf16.mxu0 %v839
        %944 = vmatpush1.bf16.msra.mxu0 %v838
        %945 = vmatprep.subr.bf16.mxu0 %v835
        %946 = vmatpush1.bf16.msra.mxu0 %v834
        %947 = vmatprep.subr.bf16.mxu0 %v831
        %948 = vmatpush1.bf16.msra.mxu0 %v830
        %949 = vmatprep.subr.bf16.mxu0 0
        %950 = vmatpush2.bf16.msra.mxu0 0
        %951 = vmatprep.subr.bf16.mxu0 0
        %952 = vmatpush2.bf16.msra.mxu0 0
        %953 = vmatprep.subr.bf16.mxu0 0
        %954 = vmatpush2.bf16.msra.mxu0 0
        %955 = vmatprep.subr.bf16.mxu0 0
        %956 = vmatpush2.bf16.msra.mxu0 0
        %957 = vmatprep.subr.bf16.mxu0 0
        %958 = vmatpush2.bf16.msra.mxu0 0
        %959 = vmatprep.subr.bf16.mxu0 0
        %960 = vmatpush2.bf16.msra.mxu0 0
        %961 = vmatprep.subr.bf16.mxu0 0
        %962 = vmatpush2.bf16.msra.mxu0 0
        %963 = vmatprep.subr.bf16.mxu0 0
        %964 = vmatpush2.bf16.msra.mxu0 0
        %965 = vmatprep.mubr.bf16.mxu0 0
        %966 = vmatmul.mubr.bf16.gmra.mxu0 %v425
        %v967 = vpop.f32.mrf.mxu0
        %v968 = vadd.f32 0.0, %v967
        %v969 = vpop.f32.mrf.mxu0
        %v970 = vadd.f32 0.0, %v969
        %v971 = vpop.f32.mrf.mxu0
        %v972 = vpop.f32.mrf.mxu0
        %973 = vdwg.mxu0
        %v974 = vld [vmem:[#allocation8] sm:$0xff]
        %v975 = vld [vmem:[#allocation8 + $0x8] sm:$0xff]
        %v976 = vld [vmem:[#allocation8 + $0x10] sm:$0xff]
        %v977 = vld [vmem:[#allocation8 + $0x18] sm:$0xff]
        %v978 = vld [vmem:[#allocation8 + $0x20] sm:$0xff]
        %v979 = vld [vmem:[#allocation8 + $0x28] sm:$0xff]
        %v980 = vld [vmem:[#allocation8 + $0x30] sm:$0xff]
        %v981 = vld [vmem:[#allocation8 + $0x38] sm:$0xff]
        %v982 = vld [vmem:[#allocation8 + $0x40] sm:$0xff]
        %v983 = vld [vmem:[#allocation8 + $0x48] sm:$0xff]
        %v984 = vld [vmem:[#allocation8 + $0x50] sm:$0xff]
        %v985 = vld [vmem:[#allocation8 + $0x58] sm:$0xff]
        %v986 = vld [vmem:[#allocation8 + $0x60] sm:$0xff]
        %v987 = vld [vmem:[#allocation8 + $0x68] sm:$0xff]
        %v988 = vld [vmem:[#allocation8 + $0x70] sm:$0xff]
        %v989 = vld [vmem:[#allocation8 + $0x78] sm:$0xff]
        %v990 = vld [vmem:[#allocation8 + $0x80] sm:$0xff]
        %v991 = vld [vmem:[#allocation8 + $0x88] sm:$0xff]
        %v992 = vld [vmem:[#allocation8 + $0x90] sm:$0xff]
        %v993 = vld [vmem:[#allocation8 + $0x98] sm:$0xff]
        %v994 = vld [vmem:[#allocation8 + $0xa0] sm:$0xff]
        %v995 = vld [vmem:[#allocation8 + $0xa8] sm:$0xff]
        %v996 = vld [vmem:[#allocation8 + $0xb0] sm:$0xff]
        %v997 = vld [vmem:[#allocation8 + $0xb8] sm:$0xff]
        %v998 = vld [vmem:[#allocation8 + $0xc0] sm:$0xff]
        %v999 = vld [vmem:[#allocation8 + $0xc8] sm:$0xff]
        %v1000 = vld [vmem:[#allocation8 + $0xd0] sm:$0xff]
        %v1001 = vld [vmem:[#allocation8 + $0xd8] sm:$0xff]
        %v1002 = vld [vmem:[#allocation8 + $0xe0] sm:$0xff]
        %v1003 = vld [vmem:[#allocation8 + $0xe8] sm:$0xff]
        %v1004 = vld [vmem:[#allocation8 + $0xf0] sm:$0xff]
        %v1005 = vld [vmem:[#allocation8 + $0xf8] sm:$0xff]
        %v1038 = vunpack.c.l.b16 %v974
        %v1039 = vunpack.c.h.b16 %v974
        %v1040 = vunpack.c.l.b16 %v975
        %v1041 = vunpack.c.h.b16 %v975
        %v1042 = vunpack.c.l.b16 %v976
        %v1043 = vunpack.c.h.b16 %v976
        %v1044 = vunpack.c.l.b16 %v977
        %v1045 = vunpack.c.h.b16 %v977
        %v1046 = vunpack.c.l.b16 %v978
        %v1047 = vunpack.c.h.b16 %v978
        %v1048 = vunpack.c.l.b16 %v979
        %v1049 = vunpack.c.h.b16 %v979
        %v1050 = vunpack.c.l.b16 %v980
        %v1051 = vunpack.c.h.b16 %v980
        %v1052 = vunpack.c.l.b16 %v981
        %v1053 = vunpack.c.h.b16 %v981
        %v1054 = vunpack.c.l.b16 %v982
        %v1055 = vunpack.c.h.b16 %v982
        %v1056 = vunpack.c.l.b16 %v983
        %v1057 = vunpack.c.h.b16 %v983
        %v1058 = vunpack.c.l.b16 %v984
        %v1059 = vunpack.c.h.b16 %v984
        %v1060 = vunpack.c.l.b16 %v985
        %v1061 = vunpack.c.h.b16 %v985
        %v1062 = vunpack.c.l.b16 %v986
        %v1063 = vunpack.c.h.b16 %v986
        %v1064 = vunpack.c.l.b16 %v987
        %v1065 = vunpack.c.h.b16 %v987
        %v1066 = vunpack.c.l.b16 %v988
        %v1067 = vunpack.c.h.b16 %v988
        %v1068 = vunpack.c.l.b16 %v989
        %v1069 = vunpack.c.h.b16 %v989
        %v1070 = vunpack.c.l.b16 %v990
        %v1071 = vunpack.c.h.b16 %v990
        %v1072 = vunpack.c.l.b16 %v991
        %v1073 = vunpack.c.h.b16 %v991
        %v1074 = vunpack.c.l.b16 %v992
        %v1075 = vunpack.c.h.b16 %v992
        %v1076 = vunpack.c.l.b16 %v993
        %v1077 = vunpack.c.h.b16 %v993
        %v1078 = vunpack.c.l.b16 %v994
        %v1079 = vunpack.c.h.b16 %v994
        %v1080 = vunpack.c.l.b16 %v995
        %v1081 = vunpack.c.h.b16 %v995
        %v1082 = vunpack.c.l.b16 %v996
        %v1083 = vunpack.c.h.b16 %v996
        %v1084 = vunpack.c.l.b16 %v997
        %v1085 = vunpack.c.h.b16 %v997
        %v1086 = vunpack.c.l.b16 %v998
        %v1087 = vunpack.c.h.b16 %v998
        %v1088 = vunpack.c.l.b16 %v999
        %v1089 = vunpack.c.h.b16 %v999
        %v1090 = vunpack.c.l.b16 %v1000
        %v1091 = vunpack.c.h.b16 %v1000
        %v1092 = vunpack.c.l.b16 %v1001
        %v1093 = vunpack.c.h.b16 %v1001
        %v1094 = vunpack.c.l.b16 %v1002
        %v1095 = vunpack.c.h.b16 %v1002
        %v1096 = vunpack.c.l.b16 %v1003
        %v1097 = vunpack.c.h.b16 %v1003
        %v1098 = vunpack.c.l.b16 %v1004
        %v1099 = vunpack.c.h.b16 %v1004
        %v1100 = vunpack.c.l.b16 %v1005
        %v1101 = vunpack.c.h.b16 %v1005
        %v1102 = vpack.c.b16 %v1042, %v1038
        %v1103 = vpack.c.b16 %v1043, %v1039
        %v1104 = vpack.c.b16 %v1044, %v1040
        %v1105 = vpack.c.b16 %v1045, %v1041
        %v1106 = vpack.c.b16 %v1050, %v1046
        %v1107 = vpack.c.b16 %v1051, %v1047
        %v1108 = vpack.c.b16 %v1052, %v1048
        %v1109 = vpack.c.b16 %v1053, %v1049
        %v1110 = vpack.c.b16 %v1058, %v1054
        %v1111 = vpack.c.b16 %v1059, %v1055
        %v1112 = vpack.c.b16 %v1060, %v1056
        %v1113 = vpack.c.b16 %v1061, %v1057
        %v1114 = vpack.c.b16 %v1066, %v1062
        %v1115 = vpack.c.b16 %v1067, %v1063
        %v1116 = vpack.c.b16 %v1068, %v1064
        %v1117 = vpack.c.b16 %v1069, %v1065
        %v1118 = vpack.c.b16 %v1074, %v1070
        %v1119 = vpack.c.b16 %v1075, %v1071
        %v1120 = vpack.c.b16 %v1076, %v1072
        %v1121 = vpack.c.b16 %v1077, %v1073
        %v1122 = vpack.c.b16 %v1082, %v1078
        %v1123 = vpack.c.b16 %v1083, %v1079
        %v1124 = vpack.c.b16 %v1084, %v1080
        %v1125 = vpack.c.b16 %v1085, %v1081
        %v1126 = vpack.c.b16 %v1090, %v1086
        %v1127 = vpack.c.b16 %v1091, %v1087
        %v1128 = vpack.c.b16 %v1092, %v1088
        %v1129 = vpack.c.b16 %v1093, %v1089
        %v1130 = vpack.c.b16 %v1098, %v1094
        %v1131 = vpack.c.b16 %v1099, %v1095
        %v1132 = vpack.c.b16 %v1100, %v1096
        %v1133 = vpack.c.b16 %v1101, %v1097
        %1166 = vmatprep.subr.bf16.mxu0 %v1131
        %1167 = vmatpush1.bf16.msra.mxu0 %v1130
        %1168 = vmatprep.subr.bf16.mxu0 %v1127
        %1169 = vmatpush1.bf16.msra.mxu0 %v1126
        %1170 = vmatprep.subr.bf16.mxu0 %v1123
        %1171 = vmatpush1.bf16.msra.mxu0 %v1122
        %1172 = vmatprep.subr.bf16.mxu0 %v1119
        %1173 = vmatpush1.bf16.msra.mxu0 %v1118
        %1174 = vmatprep.subr.bf16.mxu0 %v1115
        %1175 = vmatpush1.bf16.msra.mxu0 %v1114
        %1176 = vmatprep.subr.bf16.mxu0 %v1111
        %1177 = vmatpush1.bf16.msra.mxu0 %v1110
        %1178 = vmatprep.subr.bf16.mxu0 %v1107
        %1179 = vmatpush1.bf16.msra.mxu0 %v1106
        %1180 = vmatprep.subr.bf16.mxu0 %v1103
        %1181 = vmatpush1.bf16.msra.mxu0 %v1102
        %1182 = vmatprep.subr.bf16.mxu0 0
        %1183 = vmatpush2.bf16.msra.mxu0 0
        %1184 = vmatprep.subr.bf16.mxu0 0
        %1185 = vmatpush2.bf16.msra.mxu0 0
        %1186 = vmatprep.subr.bf16.mxu0 0
        %1187 = vmatpush2.bf16.msra.mxu0 0
        %1188 = vmatprep.subr.bf16.mxu0 0
        %1189 = vmatpush2.bf16.msra.mxu0 0
        %1190 = vmatprep.subr.bf16.mxu0 0
        %1191 = vmatpush2.bf16.msra.mxu0 0
        %1192 = vmatprep.subr.bf16.mxu0 0
        %1193 = vmatpush2.bf16.msra.mxu0 0
        %1194 = vmatprep.subr.bf16.mxu0 0
        %1195 = vmatpush2.bf16.msra.mxu0 0
        %1196 = vmatprep.subr.bf16.mxu0 0
        %1197 = vmatpush2.bf16.msra.mxu0 0
        %1198 = vmatprep.mubr.bf16.mxu0 0
        %1199 = vmatmul.mubr.bf16.gmra.mxu0 %v425
        %v1200 = vpop.f32.mrf.mxu0
        %v1201 = vadd.f32 0.0, %v1200
        %v1202 = vpop.f32.mrf.mxu0
        %v1203 = vadd.f32 0.0, %v1202
        %v1204 = vpop.f32.mrf.mxu0
        %v1205 = vpop.f32.mrf.mxu0
        %1206 = vdwg.mxu0
        %1207 = vmatprep.subr.bf16.mxu0 %v1133
        %1208 = vmatpush1.bf16.msra.mxu0 %v1132
        %1209 = vmatprep.subr.bf16.mxu0 %v1129
        %1210 = vmatpush1.bf16.msra.mxu0 %v1128
        %1211 = vmatprep.subr.bf16.mxu0 %v1125
        %1212 = vmatpush1.bf16.msra.mxu0 %v1124
        %1213 = vmatprep.subr.bf16.mxu0 %v1121
        %1214 = vmatpush1.bf16.msra.mxu0 %v1120
        %1215 = vmatprep.subr.bf16.mxu0 %v1117
        %1216 = vmatpush1.bf16.msra.mxu0 %v1116
        %1217 = vmatprep.subr.bf16.mxu0 %v1113
        %1218 = vmatpush1.bf16.msra.mxu0 %v1112
        %1219 = vmatprep.subr.bf16.mxu0 %v1109
        %1220 = vmatpush1.bf16.msra.mxu0 %v1108
        %1221 = vmatprep.subr.bf16.mxu0 %v1105
        %1222 = vmatpush1.bf16.msra.mxu0 %v1104
        %1223 = vmatprep.subr.bf16.mxu0 0
        %1224 = vmatpush2.bf16.msra.mxu0 0
        %1225 = vmatprep.subr.bf16.mxu0 0
        %1226 = vmatpush2.bf16.msra.mxu0 0
        %1227 = vmatprep.subr.bf16.mxu0 0
        %1228 = vmatpush2.bf16.msra.mxu0 0
        %1229 = vmatprep.subr.bf16.mxu0 0
        %1230 = vmatpush2.bf16.msra.mxu0 0
        %1231 = vmatprep.subr.bf16.mxu0 0
        %1232 = vmatpush2.bf16.msra.mxu0 0
        %1233 = vmatprep.subr.bf16.mxu0 0
        %1234 = vmatpush2.bf16.msra.mxu0 0
        %1235 = vmatprep.subr.bf16.mxu0 0
        %1236 = vmatpush2.bf16.msra.mxu0 0
        %1237 = vmatprep.subr.bf16.mxu0 0
        %1238 = vmatpush2.bf16.msra.mxu0 0
        %1239 = vmatprep.mubr.bf16.mxu0 0
        %1240 = vmatmul.mubr.bf16.gmra.mxu0 %v425
        %v1241 = vpop.f32.mrf.mxu0
        %v1242 = vadd.f32 0.0, %v1241
        %v1243 = vpop.f32.mrf.mxu0
        %v1244 = vadd.f32 0.0, %v1243
        %v1245 = vpop.f32.mrf.mxu0
        %v1246 = vpop.f32.mrf.mxu0
        %1247 = vdwg.mxu0
        %v1248 = vlaneseq
        %v1249 = vshrl.u32 %v1248, 7
        %v1250 = vlaneseq
        %v1251 = vand.u32 %v1250, 127
        %vm1252 = vcmp.ge.s32.totalorder %v1249, %v1251
        %v1253 = vpack.c.bf16 %v653, %v653
        %v1254 = vpack.c.bf16 %v927, %v927
        %v1255 = vpack.c.bf16 %v1201, %v1201
        %1256 = vmatprep.subr.bf16.mxu0 0
        %1257 = vmatpush1.bf16.xpose.msra.mxu0 0
        %1258 = vmatprep.subr.bf16.mxu0 0
        %1259 = vmatpush1.bf16.xpose.msra.mxu0 0
        %1260 = vmatprep.subr.bf16.mxu0 0
        %1261 = vmatpush1.bf16.xpose.msra.mxu0 0
        %1262 = vmatprep.subr.bf16.mxu0 0
        %1263 = vmatpush1.bf16.xpose.msra.mxu0 0
        %1264 = vmatprep.subr.bf16.mxu0 0
        %1265 = vmatpush1.bf16.xpose.msra.mxu0 0
        %1266 = vmatprep.subr.bf16.mxu0 0
        %1267 = vmatpush1.bf16.xpose.msra.mxu0 0
        %1268 = vmatprep.subr.bf16.mxu0 0
        %1269 = vmatpush1.bf16.xpose.msra.mxu0 0
        %1270 = vmatprep.subr.bf16.mxu0 0
        %1271 = vmatpush1.bf16.xpose.msra.mxu0 %v1254
        %1272 = vmatprep.subr.bf16.mxu0 0
        %1273 = vmatpush2.bf16.xpose.msra.mxu0 0
        %1274 = vmatprep.subr.bf16.mxu0 0
        %1275 = vmatpush2.bf16.xpose.msra.mxu0 0
        %1276 = vmatprep.subr.bf16.mxu0 0
        %1277 = vmatpush2.bf16.xpose.msra.mxu0 0
        %1278 = vmatprep.subr.bf16.mxu0 0
        %1279 = vmatpush2.bf16.xpose.msra.mxu0 0
        %1280 = vmatprep.subr.bf16.mxu0 0
        %1281 = vmatpush2.bf16.xpose.msra.mxu0 0
        %1282 = vmatprep.subr.bf16.mxu0 0
        %1283 = vmatpush2.bf16.xpose.msra.mxu0 0
        %1284 = vmatprep.subr.bf16.mxu0 0
        %1285 = vmatpush2.bf16.xpose.msra.mxu0 0
        %1286 = vmatprep.subr.bf16.mxu0 0
        %1287 = vmatpush2.bf16.xpose.msra.mxu0 0
        %1288 = vmatprep.mubr.bf16.mxu0 0
        %1289 = vmatmul.mubr.bf16.gmra.mxu0 %v1253
        %v1290 = vpop.f32.mrf.mxu0
        %v1291 = vadd.f32 0.0, %v1290
        %v1292 = vpop.f32.mrf.mxu0
        %v1293 = vpop.f32.mrf.mxu0
        %v1294 = vpop.f32.mrf.mxu0
        %1295 = vdwg.mxu0
        %v1296 = vsel %vm1252, %v1291, -1e+30
        %vm1297 = vcmask 64512
        %v1298 = vsel %vm1297, %v1296, -inf
        %1299 = vmax.xlane.f32.xlu0 %v1298
        %v1300 = vpop.xlane.xlu0 %1299
        %v1301 = vsub.f32 %v1296, %v1300
        %v1302 = vmul.f32 %v1301, 1.442695
        %v1303 = vpow.pop %v1302
        %v1304 = vsel %vm1297, %v1303, 0.0
        %1305 = vadd.xlane.f32.xlu0 %v1304
        %v1306 = vpop.xlane.xlu0 %1305
        %v1307 = vrcp.pop %v1306
        %v1308 = vmul.f32 %v1303, %v1307
        %v1309 = vpack.c.bf16 %v1308, %v1308
        %v1311 = vsel %vm1297, %v1309, 0
        %vm1313 = vcmask 1043456
        %v1315 = vsel %vm1313, %v1255, 0
        %1317 = vmatprep.subr.bf16.mxu0 0
        %1318 = vmatpush1.bf16.msra.mxu0 0
        %1319 = vmatprep.subr.bf16.mxu0 0
        %1320 = vmatpush1.bf16.msra.mxu0 0
        %1321 = vmatprep.subr.bf16.mxu0 0
        %1322 = vmatpush1.bf16.msra.mxu0 0
        %1323 = vmatprep.subr.bf16.mxu0 0
        %1324 = vmatpush1.bf16.msra.mxu0 0
        %1325 = vmatprep.subr.bf16.mxu0 0
        %1326 = vmatpush1.bf16.msra.mxu0 0
        %1327 = vmatprep.subr.bf16.mxu0 0
        %1328 = vmatpush1.bf16.msra.mxu0 0
        %1329 = vmatprep.subr.bf16.mxu0 0
        %1330 = vmatpush1.bf16.msra.mxu0 0
        %1331 = vmatprep.subr.bf16.mxu0 0
        %1332 = vmatpush1.bf16.msra.mxu0 %v1315
        %1333 = vmatprep.subr.bf16.mxu0 0
        %1334 = vmatpush2.bf16.msra.mxu0 0
        %1335 = vmatprep.subr.bf16.mxu0 0
        %1336 = vmatpush2.bf16.msra.mxu0 0
        %1337 = vmatprep.subr.bf16.mxu0 0
        %1338 = vmatpush2.bf16.msra.mxu0 0
        %1339 = vmatprep.subr.bf16.mxu0 0
        %1340 = vmatpush2.bf16.msra.mxu0 0
        %1341 = vmatprep.subr.bf16.mxu0 0
        %1342 = vmatpush2.bf16.msra.mxu0 0
        %1343 = vmatprep.subr.bf16.mxu0 0
        %1344 = vmatpush2.bf16.msra.mxu0 0
        %1345 = vmatprep.subr.bf16.mxu0 0
        %1346 = vmatpush2.bf16.msra.mxu0 0
        %1347 = vmatprep.subr.bf16.mxu0 0
        %1348 = vmatpush2.bf16.msra.mxu0 0
        %1349 = vmatprep.mubr.bf16.mxu0 0
        %1350 = vmatmul.mubr.bf16.gmra.mxu0 %v1311
        %v1351 = vpop.f32.mrf.mxu0
        %v1352 = vadd.f32 0.0, %v1351
        %v1353 = vpop.f32.mrf.mxu0
        %v1354 = vpop.f32.mrf.mxu0
        %v1355 = vpop.f32.mrf.mxu0
        %1356 = vdwg.mxu0
        %v1357 = vpack.c.bf16 %v655, %v655
        %v1358 = vpack.c.bf16 %v929, %v929
        %v1359 = vpack.c.bf16 %v1203, %v1203
        %1360 = vmatprep.subr.bf16.mxu0 0
        %1361 = vmatpush1.bf16.xpose.msra.mxu0 0
        %1362 = vmatprep.subr.bf16.mxu0 0
        %1363 = vmatpush1.bf16.xpose.msra.mxu0 0
        %1364 = vmatprep.subr.bf16.mxu0 0
        %1365 = vmatpush1.bf16.xpose.msra.mxu0 0
        %1366 = vmatprep.subr.bf16.mxu0 0
        %1367 = vmatpush1.bf16.xpose.msra.mxu0 0
        %1368 = vmatprep.subr.bf16.mxu0 0
        %1369 = vmatpush1.bf16.xpose.msra.mxu0 0
        %1370 = vmatprep.subr.bf16.mxu0 0
        %1371 = vmatpush1.bf16.xpose.msra.mxu0 0
        %1372 = vmatprep.subr.bf16.mxu0 0
        %1373 = vmatpush1.bf16.xpose.msra.mxu0 0
        %1374 = vmatprep.subr.bf16.mxu0 0
        %1375 = vmatpush1.bf16.xpose.msra.mxu0 %v1358
        %1376 = vmatprep.subr.bf16.mxu0 0
        %1377 = vmatpush2.bf16.xpose.msra.mxu0 0
        %1378 = vmatprep.subr.bf16.mxu0 0
        %1379 = vmatpush2.bf16.xpose.msra.mxu0 0
        %1380 = vmatprep.subr.bf16.mxu0 0
        %1381 = vmatpush2.bf16.xpose.msra.mxu0 0
        %1382 = vmatprep.subr.bf16.mxu0 0
        %1383 = vmatpush2.bf16.xpose.msra.mxu0 0
        %1384 = vmatprep.subr.bf16.mxu0 0
        %1385 = vmatpush2.bf16.xpose.msra.mxu0 0
        %1386 = vmatprep.subr.bf16.mxu0 0
        %1387 = vmatpush2.bf16.xpose.msra.mxu0 0
        %1388 = vmatprep.subr.bf16.mxu0 0
        %1389 = vmatpush2.bf16.xpose.msra.mxu0 0
        %1390 = vmatprep.subr.bf16.mxu0 0
        %1391 = vmatpush2.bf16.xpose.msra.mxu0 0
        %1392 = vmatprep.mubr.bf16.mxu0 0
        %1393 = vmatmul.mubr.bf16.gmra.mxu0 %v1357
        %v1394 = vpop.f32.mrf.mxu0
        %v1395 = vadd.f32 0.0, %v1394
        %v1396 = vpop.f32.mrf.mxu0
        %v1397 = vpop.f32.mrf.mxu0
        %v1398 = vpop.f32.mrf.mxu0
        %1399 = vdwg.mxu0
        %v1400 = vsel %vm1252, %v1395, -1e+30
        %v1401 = vsel %vm1297, %v1400, -inf
        %1402 = vmax.xlane.f32.xlu0 %v1401
        %v1403 = vpop.xlane.xlu0 %1402
        %v1404 = vsub.f32 %v1400, %v1403
        %v1405 = vmul.f32 %v1404, 1.442695
        %v1406 = vpow.pop %v1405
        %v1407 = vsel %vm1297, %v1406, 0.0
        %1408 = vadd.xlane.f32.xlu0 %v1407
        %v1409 = vpop.xlane.xlu0 %1408
        %v1410 = vrcp.pop %v1409
        %v1411 = vmul.f32 %v1406, %v1410
        %v1412 = vpack.c.bf16 %v1411, %v1411
        %v1414 = vsel %vm1297, %v1412, 0
        %v1417 = vsel %vm1313, %v1359, 0
        %1419 = vmatprep.subr.bf16.mxu0 0
        %1420 = vmatpush1.bf16.msra.mxu0 0
        %1421 = vmatprep.subr.bf16.mxu0 0
        %1422 = vmatpush1.bf16.msra.mxu0 0
        %1423 = vmatprep.subr.bf16.mxu0 0
        %1424 = vmatpush1.bf16.msra.mxu0 0
        %1425 = vmatprep.subr.bf16.mxu0 0
        %1426 = vmatpush1.bf16.msra.mxu0 0
        %1427 = vmatprep.subr.bf16.mxu0 0
        %1428 = vmatpush1.bf16.msra.mxu0 0
        %1429 = vmatprep.subr.bf16.mxu0 0
        %1430 = vmatpush1.bf16.msra.mxu0 0
        %1431 = vmatprep.subr.bf16.mxu0 0
        %1432 = vmatpush1.bf16.msra.mxu0 0
        %1433 = vmatprep.subr.bf16.mxu0 0
        %1434 = vmatpush1.bf16.msra.mxu0 %v1417
        %1435 = vmatprep.subr.bf16.mxu0 0
        %1436 = vmatpush2.bf16.msra.mxu0 0
        %1437 = vmatprep.subr.bf16.mxu0 0
        %1438 = vmatpush2.bf16.msra.mxu0 0
        %1439 = vmatprep.subr.bf16.mxu0 0
        %1440 = vmatpush2.bf16.msra.mxu0 0
        %1441 = vmatprep.subr.bf16.mxu0 0
        %1442 = vmatpush2.bf16.msra.mxu0 0
        %1443 = vmatprep.subr.bf16.mxu0 0
        %1444 = vmatpush2.bf16.msra.mxu0 0
        %1445 = vmatprep.subr.bf16.mxu0 0
        %1446 = vmatpush2.bf16.msra.mxu0 0
        %1447 = vmatprep.subr.bf16.mxu0 0
        %1448 = vmatpush2.bf16.msra.mxu0 0
        %1449 = vmatprep.subr.bf16.mxu0 0
        %1450 = vmatpush2.bf16.msra.mxu0 0
        %1451 = vmatprep.mubr.bf16.mxu0 0
        %1452 = vmatmul.mubr.bf16.gmra.mxu0 %v1414
        %v1453 = vpop.f32.mrf.mxu0
        %v1454 = vadd.f32 0.0, %v1453
        %v1455 = vpop.f32.mrf.mxu0
        %v1456 = vpop.f32.mrf.mxu0
        %v1457 = vpop.f32.mrf.mxu0
        %1458 = vdwg.mxu0
        %v1459 = vpack.c.bf16 %v694, %v694
        %v1460 = vpack.c.bf16 %v968, %v968
        %v1461 = vpack.c.bf16 %v1242, %v1242
        %1462 = vmatprep.subr.bf16.mxu0 0
        %1463 = vmatpush1.bf16.xpose.msra.mxu0 0
        %1464 = vmatprep.subr.bf16.mxu0 0
        %1465 = vmatpush1.bf16.xpose.msra.mxu0 0
        %1466 = vmatprep.subr.bf16.mxu0 0
        %1467 = vmatpush1.bf16.xpose.msra.mxu0 0
        %1468 = vmatprep.subr.bf16.mxu0 0
        %1469 = vmatpush1.bf16.xpose.msra.mxu0 0
        %1470 = vmatprep.subr.bf16.mxu0 0
        %1471 = vmatpush1.bf16.xpose.msra.mxu0 0
        %1472 = vmatprep.subr.bf16.mxu0 0
        %1473 = vmatpush1.bf16.xpose.msra.mxu0 0
        %1474 = vmatprep.subr.bf16.mxu0 0
        %1475 = vmatpush1.bf16.xpose.msra.mxu0 0
        %1476 = vmatprep.subr.bf16.mxu0 0
        %1477 = vmatpush1.bf16.xpose.msra.mxu0 %v1460
        %1478 = vmatprep.subr.bf16.mxu0 0
        %1479 = vmatpush2.bf16.xpose.msra.mxu0 0
        %1480 = vmatprep.subr.bf16.mxu0 0
        %1481 = vmatpush2.bf16.xpose.msra.mxu0 0
        %1482 = vmatprep.subr.bf16.mxu0 0
        %1483 = vmatpush2.bf16.xpose.msra.mxu0 0
        %1484 = vmatprep.subr.bf16.mxu0 0
        %1485 = vmatpush2.bf16.xpose.msra.mxu0 0
        %1486 = vmatprep.subr.bf16.mxu0 0
        %1487 = vmatpush2.bf16.xpose.msra.mxu0 0
        %1488 = vmatprep.subr.bf16.mxu0 0
        %1489 = vmatpush2.bf16.xpose.msra.mxu0 0
        %1490 = vmatprep.subr.bf16.mxu0 0
        %1491 = vmatpush2.bf16.xpose.msra.mxu0 0
        %1492 = vmatprep.subr.bf16.mxu0 0
        %1493 = vmatpush2.bf16.xpose.msra.mxu0 0
        %1494 = vmatprep.mubr.bf16.mxu0 0
        %1495 = vmatmul.mubr.bf16.gmra.mxu0 %v1459
        %v1496 = vpop.f32.mrf.mxu0
        %v1497 = vadd.f32 0.0, %v1496
        %v1498 = vpop.f32.mrf.mxu0
        %v1499 = vpop.f32.mrf.mxu0
        %v1500 = vpop.f32.mrf.mxu0
        %1501 = vdwg.mxu0
        %v1502 = vsel %vm1252, %v1497, -1e+30
        %v1503 = vsel %vm1297, %v1502, -inf
        %1504 = vmax.xlane.f32.xlu0 %v1503
        %v1505 = vpop.xlane.xlu0 %1504
        %v1506 = vsub.f32 %v1502, %v1505
        %v1507 = vmul.f32 %v1506, 1.442695
        %v1508 = vpow.pop %v1507
        %v1509 = vsel %vm1297, %v1508, 0.0
        %1510 = vadd.xlane.f32.xlu0 %v1509
        %v1511 = vpop.xlane.xlu0 %1510
        %v1512 = vrcp.pop %v1511
        %v1513 = vmul.f32 %v1508, %v1512
        %v1514 = vpack.c.bf16 %v1513, %v1513
        %v1516 = vsel %vm1297, %v1514, 0
        %v1519 = vsel %vm1313, %v1461, 0
        %1521 = vmatprep.subr.bf16.mxu0 0
        %1522 = vmatpush1.bf16.msra.mxu0 0
        %1523 = vmatprep.subr.bf16.mxu0 0
        %1524 = vmatpush1.bf16.msra.mxu0 0
        %1525 = vmatprep.subr.bf16.mxu0 0
        %1526 = vmatpush1.bf16.msra.mxu0 0
        %1527 = vmatprep.subr.bf16.mxu0 0
        %1528 = vmatpush1.bf16.msra.mxu0 0
        %1529 = vmatprep.subr.bf16.mxu0 0
        %1530 = vmatpush1.bf16.msra.mxu0 0
        %1531 = vmatprep.subr.bf16.mxu0 0
        %1532 = vmatpush1.bf16.msra.mxu0 0
        %1533 = vmatprep.subr.bf16.mxu0 0
        %1534 = vmatpush1.bf16.msra.mxu0 0
        %1535 = vmatprep.subr.bf16.mxu0 0
        %1536 = vmatpush1.bf16.msra.mxu0 %v1519
        %1537 = vmatprep.subr.bf16.mxu0 0
        %1538 = vmatpush2.bf16.msra.mxu0 0
        %1539 = vmatprep.subr.bf16.mxu0 0
        %1540 = vmatpush2.bf16.msra.mxu0 0
        %1541 = vmatprep.subr.bf16.mxu0 0
        %1542 = vmatpush2.bf16.msra.mxu0 0
        %1543 = vmatprep.subr.bf16.mxu0 0
        %1544 = vmatpush2.bf16.msra.mxu0 0
        %1545 = vmatprep.subr.bf16.mxu0 0
        %1546 = vmatpush2.bf16.msra.mxu0 0
        %1547 = vmatprep.subr.bf16.mxu0 0
        %1548 = vmatpush2.bf16.msra.mxu0 0
        %1549 = vmatprep.subr.bf16.mxu0 0
        %1550 = vmatpush2.bf16.msra.mxu0 0
        %1551 = vmatprep.subr.bf16.mxu0 0
        %1552 = vmatpush2.bf16.msra.mxu0 0
        %1553 = vmatprep.mubr.bf16.mxu0 0
        %1554 = vmatmul.mubr.bf16.gmra.mxu0 %v1516
        %v1555 = vpop.f32.mrf.mxu0
        %v1556 = vadd.f32 0.0, %v1555
        %v1557 = vpop.f32.mrf.mxu0
        %v1558 = vpop.f32.mrf.mxu0
        %v1559 = vpop.f32.mrf.mxu0
        %1560 = vdwg.mxu0
        %v1561 = vpack.c.bf16 %v696, %v696
        %v1562 = vpack.c.bf16 %v970, %v970
        %v1563 = vpack.c.bf16 %v1244, %v1244
        %1564 = vmatprep.subr.bf16.mxu0 0
        %1565 = vmatpush1.bf16.xpose.msra.mxu0 0
        %1566 = vmatprep.subr.bf16.mxu0 0
        %1567 = vmatpush1.bf16.xpose.msra.mxu0 0
        %1568 = vmatprep.subr.bf16.mxu0 0
        %1569 = vmatpush1.bf16.xpose.msra.mxu0 0
        %1570 = vmatprep.subr.bf16.mxu0 0
        %1571 = vmatpush1.bf16.xpose.msra.mxu0 0
        %1572 = vmatprep.subr.bf16.mxu0 0
        %1573 = vmatpush1.bf16.xpose.msra.mxu0 0
        %1574 = vmatprep.subr.bf16.mxu0 0
        %1575 = vmatpush1.bf16.xpose.msra.mxu0 0
        %1576 = vmatprep.subr.bf16.mxu0 0
        %1577 = vmatpush1.bf16.xpose.msra.mxu0 0
        %1578 = vmatprep.subr.bf16.mxu0 0
        %1579 = vmatpush1.bf16.xpose.msra.mxu0 %v1562
        %1580 = vmatprep.subr.bf16.mxu0 0
        %1581 = vmatpush2.bf16.xpose.msra.mxu0 0
        %1582 = vmatprep.subr.bf16.mxu0 0
        %1583 = vmatpush2.bf16.xpose.msra.mxu0 0
        %1584 = vmatprep.subr.bf16.mxu0 0
        %1585 = vmatpush2.bf16.xpose.msra.mxu0 0
        %1586 = vmatprep.subr.bf16.mxu0 0
        %1587 = vmatpush2.bf16.xpose.msra.mxu0 0
        %1588 = vmatprep.subr.bf16.mxu0 0
        %1589 = vmatpush2.bf16.xpose.msra.mxu0 0
        %1590 = vmatprep.subr.bf16.mxu0 0
        %1591 = vmatpush2.bf16.xpose.msra.mxu0 0
        %1592 = vmatprep.subr.bf16.mxu0 0
        %1593 = vmatpush2.bf16.xpose.msra.mxu0 0
        %1594 = vmatprep.subr.bf16.mxu0 0
        %1595 = vmatpush2.bf16.xpose.msra.mxu0 0
        %1596 = vmatprep.mubr.bf16.mxu0 0
        %1597 = vmatmul.mubr.bf16.gmra.mxu0 %v1561
        %v1598 = vpop.f32.mrf.mxu0
        %v1599 = vadd.f32 0.0, %v1598
        %v1600 = vpop.f32.mrf.mxu0
        %v1601 = vpop.f32.mrf.mxu0
        %v1602 = vpop.f32.mrf.mxu0
        %1603 = vdwg.mxu0
        %v1604 = vsel %vm1252, %v1599, -1e+30
        %v1605 = vsel %vm1297, %v1604, -inf
        %1606 = vmax.xlane.f32.xlu0 %v1605
        %v1607 = vpop.xlane.xlu0 %1606
        %v1608 = vsub.f32 %v1604, %v1607
        %v1609 = vmul.f32 %v1608, 1.442695
        %v1610 = vpow.pop %v1609
        %v1611 = vsel %vm1297, %v1610, 0.0
        %1612 = vadd.xlane.f32.xlu0 %v1611
        %v1613 = vpop.xlane.xlu0 %1612
        %v1614 = vrcp.pop %v1613
        %v1615 = vmul.f32 %v1610, %v1614
        %v1616 = vpack.c.bf16 %v1615, %v1615
        %v1618 = vsel %vm1297, %v1616, 0
        %v1621 = vsel %vm1313, %v1563, 0
        %1623 = vmatprep.subr.bf16.mxu0 0
        %1624 = vmatpush1.bf16.msra.mxu0 0
        %1625 = vmatprep.subr.bf16.mxu0 0
        %1626 = vmatpush1.bf16.msra.mxu0 0
        %1627 = vmatprep.subr.bf16.mxu0 0
        %1628 = vmatpush1.bf16.msra.mxu0 0
        %1629 = vmatprep.subr.bf16.mxu0 0
        %1630 = vmatpush1.bf16.msra.mxu0 0
        %1631 = vmatprep.subr.bf16.mxu0 0
        %1632 = vmatpush1.bf16.msra.mxu0 0
        %1633 = vmatprep.subr.bf16.mxu0 0
        %1634 = vmatpush1.bf16.msra.mxu0 0
        %1635 = vmatprep.subr.bf16.mxu0 0
        %1636 = vmatpush1.bf16.msra.mxu0 0
        %1637 = vmatprep.subr.bf16.mxu0 0
        %1638 = vmatpush1.bf16.msra.mxu0 %v1621
        %1639 = vmatprep.subr.bf16.mxu0 0
        %1640 = vmatpush2.bf16.msra.mxu0 0
        %1641 = vmatprep.subr.bf16.mxu0 0
        %1642 = vmatpush2.bf16.msra.mxu0 0
        %1643 = vmatprep.subr.bf16.mxu0 0
        %1644 = vmatpush2.bf16.msra.mxu0 0
        %1645 = vmatprep.subr.bf16.mxu0 0
        %1646 = vmatpush2.bf16.msra.mxu0 0
        %1647 = vmatprep.subr.bf16.mxu0 0
        %1648 = vmatpush2.bf16.msra.mxu0 0
        %1649 = vmatprep.subr.bf16.mxu0 0
        %1650 = vmatpush2.bf16.msra.mxu0 0
        %1651 = vmatprep.subr.bf16.mxu0 0
        %1652 = vmatpush2.bf16.msra.mxu0 0
        %1653 = vmatprep.subr.bf16.mxu0 0
        %1654 = vmatpush2.bf16.msra.mxu0 0
        %1655 = vmatprep.mubr.bf16.mxu0 0
        %1656 = vmatmul.mubr.bf16.gmra.mxu0 %v1618
        %v1657 = vpop.f32.mrf.mxu0
        %v1658 = vadd.f32 0.0, %v1657
        %v1659 = vpop.f32.mrf.mxu0
        %v1660 = vpop.f32.mrf.mxu0
        %v1661 = vpop.f32.mrf.mxu0
        %1662 = vdwg.mxu0
        %v1663 = vpack.c.bf16 %v1352, %v1352
        %v1664 = vpack.c.bf16 %v1454, %v1454
        %v1665 = vpack.c.bf16 %v1556, %v1556
        %v1666 = vpack.c.bf16 %v1658, %v1658
        %v1667 = vld [vmem:[#allocation10] sm:$0xf]
        %v1668 = vld [vmem:[#allocation10 + $0x4] sm:$0xf]
        %v1669 = vld [vmem:[#allocation10 + $0x8] sm:$0xf]
        %v1670 = vld [vmem:[#allocation10 + $0xc] sm:$0xf]
        %v1671 = vld [vmem:[#allocation10 + $0x10] sm:$0xf]
        %v1672 = vld [vmem:[#allocation10 + $0x14] sm:$0xf]
        %v1673 = vld [vmem:[#allocation10 + $0x18] sm:$0xf]
        %v1674 = vld [vmem:[#allocation10 + $0x1c] sm:$0xf]
        %v1675 = vld [vmem:[#allocation10 + $0x20] sm:$0xf]
        %v1676 = vld [vmem:[#allocation10 + $0x24] sm:$0xf]
        %v1677 = vld [vmem:[#allocation10 + $0x28] sm:$0xf]
        %v1678 = vld [vmem:[#allocation10 + $0x2c] sm:$0xf]
        %v1679 = vld [vmem:[#allocation10 + $0x30] sm:$0xf]
        %v1680 = vld [vmem:[#allocation10 + $0x34] sm:$0xf]
        %v1681 = vld [vmem:[#allocation10 + $0x38] sm:$0xf]
        %v1682 = vld [vmem:[#allocation10 + $0x3c] sm:$0xf]
        %v1683 = vld [vmem:[#allocation10 + $0x40] sm:$0xf]
        %v1684 = vld [vmem:[#allocation10 + $0x44] sm:$0xf]
        %v1685 = vld [vmem:[#allocation10 + $0x48] sm:$0xf]
        %v1686 = vld [vmem:[#allocation10 + $0x4c] sm:$0xf]
        %v1687 = vld [vmem:[#allocation10 + $0x50] sm:$0xf]
        %v1688 = vld [vmem:[#allocation10 + $0x54] sm:$0xf]
        %v1689 = vld [vmem:[#allocation10 + $0x58] sm:$0xf]
        %v1690 = vld [vmem:[#allocation10 + $0x5c] sm:$0xf]
        %v1691 = vld [vmem:[#allocation10 + $0x60] sm:$0xf]
        %v1692 = vld [vmem:[#allocation10 + $0x64] sm:$0xf]
        %v1693 = vld [vmem:[#allocation10 + $0x68] sm:$0xf]
        %v1694 = vld [vmem:[#allocation10 + $0x6c] sm:$0xf]
        %v1695 = vld [vmem:[#allocation10 + $0x70] sm:$0xf]
        %v1696 = vld [vmem:[#allocation10 + $0x74] sm:$0xf]
        %v1697 = vld [vmem:[#allocation10 + $0x78] sm:$0xf]
        %v1698 = vld [vmem:[#allocation10 + $0x7c] sm:$0xf]
        %v1699 = vld [vmem:[#allocation10 + $0x80] sm:$0xf]
        %v1700 = vld [vmem:[#allocation10 + $0x84] sm:$0xf]
        %v1701 = vld [vmem:[#allocation10 + $0x88] sm:$0xf]
        %v1702 = vld [vmem:[#allocation10 + $0x8c] sm:$0xf]
        %v1703 = vld [vmem:[#allocation10 + $0x90] sm:$0xf]
        %v1704 = vld [vmem:[#allocation10 + $0x94] sm:$0xf]
        %v1705 = vld [vmem:[#allocation10 + $0x98] sm:$0xf]
        %v1706 = vld [vmem:[#allocation10 + $0x9c] sm:$0xf]
        %v1707 = vld [vmem:[#allocation10 + $0xa0] sm:$0xf]
        %v1708 = vld [vmem:[#allocation10 + $0xa4] sm:$0xf]
        %v1709 = vld [vmem:[#allocation10 + $0xa8] sm:$0xf]
        %v1710 = vld [vmem:[#allocation10 + $0xac] sm:$0xf]
        %v1711 = vld [vmem:[#allocation10 + $0xb0] sm:$0xf]
        %v1712 = vld [vmem:[#allocation10 + $0xb4] sm:$0xf]
        %v1713 = vld [vmem:[#allocation10 + $0xb8] sm:$0xf]
        %v1714 = vld [vmem:[#allocation10 + $0xbc] sm:$0xf]
        %v1715 = vld [vmem:[#allocation10 + $0xc0] sm:$0xf]
        %v1716 = vld [vmem:[#allocation10 + $0xc4] sm:$0xf]
        %v1717 = vld [vmem:[#allocation10 + $0xc8] sm:$0xf]
        %v1718 = vld [vmem:[#allocation10 + $0xcc] sm:$0xf]
        %v1719 = vld [vmem:[#allocation10 + $0xd0] sm:$0xf]
        %v1720 = vld [vmem:[#allocation10 + $0xd4] sm:$0xf]
        %v1721 = vld [vmem:[#allocation10 + $0xd8] sm:$0xf]
        %v1722 = vld [vmem:[#allocation10 + $0xdc] sm:$0xf]
        %v1723 = vld [vmem:[#allocation10 + $0xe0] sm:$0xf]
        %v1724 = vld [vmem:[#allocation10 + $0xe4] sm:$0xf]
        %v1725 = vld [vmem:[#allocation10 + $0xe8] sm:$0xf]
        %v1726 = vld [vmem:[#allocation10 + $0xec] sm:$0xf]
        %v1727 = vld [vmem:[#allocation10 + $0xf0] sm:$0xf]
        %v1728 = vld [vmem:[#allocation10 + $0xf4] sm:$0xf]
        %v1729 = vld [vmem:[#allocation10 + $0xf8] sm:$0xf]
        %v1730 = vld [vmem:[#allocation10 + $0xfc] sm:$0xf]
        %v1795 = vunpack.c.l.b16 %v1667
        %v1796 = vunpack.c.l.b16 %v1668
        %v1797 = vunpack.c.l.b16 %v1669
        %v1798 = vunpack.c.l.b16 %v1670
        %v1799 = vunpack.c.l.b16 %v1671
        %v1800 = vunpack.c.l.b16 %v1672
        %v1801 = vunpack.c.l.b16 %v1673
        %v1802 = vunpack.c.l.b16 %v1674
        %v1803 = vunpack.c.l.b16 %v1675
        %v1804 = vunpack.c.l.b16 %v1676
        %v1805 = vunpack.c.l.b16 %v1677
        %v1806 = vunpack.c.l.b16 %v1678
        %v1807 = vunpack.c.l.b16 %v1679
        %v1808 = vunpack.c.l.b16 %v1680
        %v1809 = vunpack.c.l.b16 %v1681
        %v1810 = vunpack.c.l.b16 %v1682
        %v1811 = vunpack.c.l.b16 %v1683
        %v1812 = vunpack.c.l.b16 %v1684
        %v1813 = vunpack.c.l.b16 %v1685
        %v1814 = vunpack.c.l.b16 %v1686
        %v1815 = vunpack.c.l.b16 %v1687
        %v1816 = vunpack.c.l.b16 %v1688
        %v1817 = vunpack.c.l.b16 %v1689
        %v1818 = vunpack.c.l.b16 %v1690
        %v1819 = vunpack.c.l.b16 %v1691
        %v1820 = vunpack.c.l.b16 %v1692
        %v1821 = vunpack.c.l.b16 %v1693
        %v1822 = vunpack.c.l.b16 %v1694
        %v1823 = vunpack.c.l.b16 %v1695
        %v1824 = vunpack.c.l.b16 %v1696
        %v1825 = vunpack.c.l.b16 %v1697
        %v1826 = vunpack.c.l.b16 %v1698
        %v1827 = vunpack.c.l.b16 %v1699
        %v1828 = vunpack.c.l.b16 %v1700
        %v1829 = vunpack.c.l.b16 %v1701
        %v1830 = vunpack.c.l.b16 %v1702
        %v1831 = vunpack.c.l.b16 %v1703
        %v1832 = vunpack.c.l.b16 %v1704
        %v1833 = vunpack.c.l.b16 %v1705
        %v1834 = vunpack.c.l.b16 %v1706
        %v1835 = vunpack.c.l.b16 %v1707
        %v1836 = vunpack.c.l.b16 %v1708
        %v1837 = vunpack.c.l.b16 %v1709
        %v1838 = vunpack.c.l.b16 %v1710
        %v1839 = vunpack.c.l.b16 %v1711
        %v1840 = vunpack.c.l.b16 %v1712
        %v1841 = vunpack.c.l.b16 %v1713
        %v1842 = vunpack.c.l.b16 %v1714
        %v1843 = vunpack.c.l.b16 %v1715
        %v1844 = vunpack.c.l.b16 %v1716
        %v1845 = vunpack.c.l.b16 %v1717
        %v1846 = vunpack.c.l.b16 %v1718
        %v1847 = vunpack.c.l.b16 %v1719
        %v1848 = vunpack.c.l.b16 %v1720
        %v1849 = vunpack.c.l.b16 %v1721
        %v1850 = vunpack.c.l.b16 %v1722
        %v1851 = vunpack.c.l.b16 %v1723
        %v1852 = vunpack.c.l.b16 %v1724
        %v1853 = vunpack.c.l.b16 %v1725
        %v1854 = vunpack.c.l.b16 %v1726
        %v1855 = vunpack.c.l.b16 %v1727
        %v1856 = vunpack.c.l.b16 %v1728
        %v1857 = vunpack.c.l.b16 %v1729
        %v1858 = vunpack.c.l.b16 %v1730
        %v1859 = vpack.c.b16 %v1796, %v1795
        %v1860 = vpack.c.b16 %v1798, %v1797
        %v1861 = vpack.c.b16 %v1800, %v1799
        %v1862 = vpack.c.b16 %v1802, %v1801
        %v1863 = vpack.c.b16 %v1804, %v1803
        %v1864 = vpack.c.b16 %v1806, %v1805
        %v1865 = vpack.c.b16 %v1808, %v1807
        %v1866 = vpack.c.b16 %v1810, %v1809
        %v1867 = vpack.c.b16 %v1812, %v1811
        %v1868 = vpack.c.b16 %v1814, %v1813
        %v1869 = vpack.c.b16 %v1816, %v1815
        %v1870 = vpack.c.b16 %v1818, %v1817
        %v1871 = vpack.c.b16 %v1820, %v1819
        %v1872 = vpack.c.b16 %v1822, %v1821
        %v1873 = vpack.c.b16 %v1824, %v1823
        %v1874 = vpack.c.b16 %v1826, %v1825
        %v1875 = vpack.c.b16 %v1828, %v1827
        %v1876 = vpack.c.b16 %v1830, %v1829
        %v1877 = vpack.c.b16 %v1832, %v1831
        %v1878 = vpack.c.b16 %v1834, %v1833
        %v1879 = vpack.c.b16 %v1836, %v1835
        %v1880 = vpack.c.b16 %v1838, %v1837
        %v1881 = vpack.c.b16 %v1840, %v1839
        %v1882 = vpack.c.b16 %v1842, %v1841
        %v1883 = vpack.c.b16 %v1844, %v1843
        %v1884 = vpack.c.b16 %v1846, %v1845
        %v1885 = vpack.c.b16 %v1848, %v1847
        %v1886 = vpack.c.b16 %v1850, %v1849
        %v1887 = vpack.c.b16 %v1852, %v1851
        %v1888 = vpack.c.b16 %v1854, %v1853
        %v1889 = vpack.c.b16 %v1856, %v1855
        %v1890 = vpack.c.b16 %v1858, %v1857
        %1923 = vmatprep.subr.bf16.mxu0 0
        %1924 = vmatpush1.bf16.msra.mxu0 %v1866
        %1925 = vmatprep.subr.bf16.mxu0 0
        %1926 = vmatpush1.bf16.msra.mxu0 %v1865
        %1927 = vmatprep.subr.bf16.mxu0 0
        %1928 = vmatpush1.bf16.msra.mxu0 %v1864
        %1929 = vmatprep.subr.bf16.mxu0 0
        %1930 = vmatpush1.bf16.msra.mxu0 %v1863
        %1931 = vmatprep.subr.bf16.mxu0 0
        %1932 = vmatpush1.bf16.msra.mxu0 %v1862
        %1933 = vmatprep.subr.bf16.mxu0 0
        %1934 = vmatpush1.bf16.msra.mxu0 %v1861
        %1935 = vmatprep.subr.bf16.mxu0 0
        %1936 = vmatpush1.bf16.msra.mxu0 %v1860
        %1937 = vmatprep.subr.bf16.mxu0 0
        %1938 = vmatpush1.bf16.msra.mxu0 %v1859
        %1939 = vmatprep.subr.bf16.mxu0 0
        %1940 = vmatpush2.bf16.msra.mxu0 %v1874
        %1941 = vmatprep.subr.bf16.mxu0 0
        %1942 = vmatpush2.bf16.msra.mxu0 %v1873
        %1943 = vmatprep.subr.bf16.mxu0 0
        %1944 = vmatpush2.bf16.msra.mxu0 %v1872
        %1945 = vmatprep.subr.bf16.mxu0 0
        %1946 = vmatpush2.bf16.msra.mxu0 %v1871
        %1947 = vmatprep.subr.bf16.mxu0 0
        %1948 = vmatpush2.bf16.msra.mxu0 %v1870
        %1949 = vmatprep.subr.bf16.mxu0 0
        %1950 = vmatpush2.bf16.msra.mxu0 %v1869
        %1951 = vmatprep.subr.bf16.mxu0 0
        %1952 = vmatpush2.bf16.msra.mxu0 %v1868
        %1953 = vmatprep.subr.bf16.mxu0 0
        %1954 = vmatpush2.bf16.msra.mxu0 %v1867
        %1955 = vmatprep.mubr.bf16.mxu0 %v1664
        %1956 = vmatmul.mubr.bf16.gmra.mxu0 %v1663
        %v1957 = vpop.f32.mrf.mxu0
        %v1958 = vadd.f32 0.0, %v1957
        %v1959 = vpop.f32.mrf.mxu0
        %v1960 = vpop.f32.mrf.mxu0
        %v1961 = vpop.f32.mrf.mxu0
        %1962 = vdwg.mxu0
        %1963 = vmatprep.subr.bf16.mxu0 0
        %1964 = vmatpush1.bf16.msra.mxu0 %v1882
        %1965 = vmatprep.subr.bf16.mxu0 0
        %1966 = vmatpush1.bf16.msra.mxu0 %v1881
        %1967 = vmatprep.subr.bf16.mxu0 0
        %1968 = vmatpush1.bf16.msra.mxu0 %v1880
        %1969 = vmatprep.subr.bf16.mxu0 0
        %1970 = vmatpush1.bf16.msra.mxu0 %v1879
        %1971 = vmatprep.subr.bf16.mxu0 0
        %1972 = vmatpush1.bf16.msra.mxu0 %v1878
        %1973 = vmatprep.subr.bf16.mxu0 0
        %1974 = vmatpush1.bf16.msra.mxu0 %v1877
        %1975 = vmatprep.subr.bf16.mxu0 0
        %1976 = vmatpush1.bf16.msra.mxu0 %v1876
        %1977 = vmatprep.subr.bf16.mxu0 0
        %1978 = vmatpush1.bf16.msra.mxu0 %v1875
        %1979 = vmatprep.subr.bf16.mxu0 0
        %1980 = vmatpush2.bf16.msra.mxu0 %v1890
        %1981 = vmatprep.subr.bf16.mxu0 0
        %1982 = vmatpush2.bf16.msra.mxu0 %v1889
        %1983 = vmatprep.subr.bf16.mxu0 0
        %1984 = vmatpush2.bf16.msra.mxu0 %v1888
        %1985 = vmatprep.subr.bf16.mxu0 0
        %1986 = vmatpush2.bf16.msra.mxu0 %v1887
        %1987 = vmatprep.subr.bf16.mxu0 0
        %1988 = vmatpush2.bf16.msra.mxu0 %v1886
        %1989 = vmatprep.subr.bf16.mxu0 0
        %1990 = vmatpush2.bf16.msra.mxu0 %v1885
        %1991 = vmatprep.subr.bf16.mxu0 0
        %1992 = vmatpush2.bf16.msra.mxu0 %v1884
        %1993 = vmatprep.subr.bf16.mxu0 0
        %1994 = vmatpush2.bf16.msra.mxu0 %v1883
        %1995 = vmatprep.mubr.bf16.mxu0 %v1666
        %1996 = vmatmul.mubr.bf16.gmra.mxu0 %v1665
        %v1997 = vpop.f32.mrf.mxu0
        %v1998 = vadd.f32 %v1958, %v1997
        %v1999 = vpop.f32.mrf.mxu0
        %v2000 = vpop.f32.mrf.mxu0
        %v2001 = vpop.f32.mrf.mxu0
        %2002 = vdwg.mxu0
        %v2003 = vadd.f32 %v409, %v1998
        %v2004 = vmul.f32 %v2003, %v2003
        %2005 = vadd.xlane.f32.xlu0 %v2004
        %v2006 = vpop.xlane.xlu0 %2005
        %v2007 = vmul.f32 %v2006, 0.03125
        %v2008 = vadd.f32 %v2007, 1e-06
        %v2009 = vrsqrt.pop %v2008
        %v2010 = vmul.f32 %v2003, %v2009
        %v2011 = vmul.f32 %v2010, %v422
        %v2012 = vpack.c.bf16 %v2011, %v2011
        %v2013 = vld [vmem:[#allocation11] sm:$0xff]
        %v2014 = vld [vmem:[#allocation11 + $0x8] sm:$0xff]
        %v2015 = vld [vmem:[#allocation11 + $0x10] sm:$0xff]
        %v2016 = vld [vmem:[#allocation11 + $0x18] sm:$0xff]
        %v2017 = vld [vmem:[#allocation11 + $0x20] sm:$0xff]
        %v2018 = vld [vmem:[#allocation11 + $0x28] sm:$0xff]
        %v2019 = vld [vmem:[#allocation11 + $0x30] sm:$0xff]
        %v2020 = vld [vmem:[#allocation11 + $0x38] sm:$0xff]
        %v2021 = vld [vmem:[#allocation11 + $0x40] sm:$0xff]
        %v2022 = vld [vmem:[#allocation11 + $0x48] sm:$0xff]
        %v2023 = vld [vmem:[#allocation11 + $0x50] sm:$0xff]
        %v2024 = vld [vmem:[#allocation11 + $0x58] sm:$0xff]
        %v2025 = vld [vmem:[#allocation11 + $0x60] sm:$0xff]
        %v2026 = vld [vmem:[#allocation11 + $0x68] sm:$0xff]
        %v2027 = vld [vmem:[#allocation11 + $0x70] sm:$0xff]
        %v2028 = vld [vmem:[#allocation11 + $0x78] sm:$0xff]
        %v2045 = vunpack.c.l.b16 %v2013
        %v2046 = vunpack.c.h.b16 %v2013
        %v2047 = vunpack.c.l.b16 %v2014
        %v2048 = vunpack.c.h.b16 %v2014
        %v2049 = vunpack.c.l.b16 %v2015
        %v2050 = vunpack.c.h.b16 %v2015
        %v2051 = vunpack.c.l.b16 %v2016
        %v2052 = vunpack.c.h.b16 %v2016
        %v2053 = vunpack.c.l.b16 %v2017
        %v2054 = vunpack.c.h.b16 %v2017
        %v2055 = vunpack.c.l.b16 %v2018
        %v2056 = vunpack.c.h.b16 %v2018
        %v2057 = vunpack.c.l.b16 %v2019
        %v2058 = vunpack.c.h.b16 %v2019
        %v2059 = vunpack.c.l.b16 %v2020
        %v2060 = vunpack.c.h.b16 %v2020
        %v2061 = vunpack.c.l.b16 %v2021
        %v2062 = vunpack.c.h.b16 %v2021
        %v2063 = vunpack.c.l.b16 %v2022
        %v2064 = vunpack.c.h.b16 %v2022
        %v2065 = vunpack.c.l.b16 %v2023
        %v2066 = vunpack.c.h.b16 %v2023
        %v2067 = vunpack.c.l.b16 %v2024
        %v2068 = vunpack.c.h.b16 %v2024
        %v2069 = vunpack.c.l.b16 %v2025
        %v2070 = vunpack.c.h.b16 %v2025
        %v2071 = vunpack.c.l.b16 %v2026
        %v2072 = vunpack.c.h.b16 %v2026
        %v2073 = vunpack.c.l.b16 %v2027
        %v2074 = vunpack.c.h.b16 %v2027
        %v2075 = vunpack.c.l.b16 %v2028
        %v2076 = vunpack.c.h.b16 %v2028
        %v2077 = vpack.c.b16 %v2047, %v2045
        %v2078 = vpack.c.b16 %v2048, %v2046
        %v2079 = vpack.c.b16 %v2051, %v2049
        %v2080 = vpack.c.b16 %v2052, %v2050
        %v2081 = vpack.c.b16 %v2055, %v2053
        %v2082 = vpack.c.b16 %v2056, %v2054
        %v2083 = vpack.c.b16 %v2059, %v2057
        %v2084 = vpack.c.b16 %v2060, %v2058
        %v2085 = vpack.c.b16 %v2063, %v2061
        %v2086 = vpack.c.b16 %v2064, %v2062
        %v2087 = vpack.c.b16 %v2067, %v2065
        %v2088 = vpack.c.b16 %v2068, %v2066
        %v2089 = vpack.c.b16 %v2071, %v2069
        %v2090 = vpack.c.b16 %v2072, %v2070
        %v2091 = vpack.c.b16 %v2075, %v2073
        %v2092 = vpack.c.b16 %v2076, %v2074
        %2109 = vmatprep.subr.bf16.mxu0 %v2092
        %2110 = vmatpush1.bf16.msra.mxu0 %v2091
        %2111 = vmatprep.subr.bf16.mxu0 %v2090
        %2112 = vmatpush1.bf16.msra.mxu0 %v2089
        %2113 = vmatprep.subr.bf16.mxu0 %v2088
        %2114 = vmatpush1.bf16.msra.mxu0 %v2087
        %2115 = vmatprep.subr.bf16.mxu0 %v2086
        %2116 = vmatpush1.bf16.msra.mxu0 %v2085
        %2117 = vmatprep.subr.bf16.mxu0 %v2084
        %2118 = vmatpush1.bf16.msra.mxu0 %v2083
        %2119 = vmatprep.subr.bf16.mxu0 %v2082
        %2120 = vmatpush1.bf16.msra.mxu0 %v2081
        %2121 = vmatprep.subr.bf16.mxu0 %v2080
        %2122 = vmatpush1.bf16.msra.mxu0 %v2079
        %2123 = vmatprep.subr.bf16.mxu0 %v2078
        %2124 = vmatpush1.bf16.msra.mxu0 %v2077
        %2125 = vmatprep.subr.bf16.mxu0 0
        %2126 = vmatpush2.bf16.msra.mxu0 0
        %2127 = vmatprep.subr.bf16.mxu0 0
        %2128 = vmatpush2.bf16.msra.mxu0 0
        %2129 = vmatprep.subr.bf16.mxu0 0
        %2130 = vmatpush2.bf16.msra.mxu0 0
        %2131 = vmatprep.subr.bf16.mxu0 0
        %2132 = vmatpush2.bf16.msra.mxu0 0
        %2133 = vmatprep.subr.bf16.mxu0 0
        %2134 = vmatpush2.bf16.msra.mxu0 0
        %2135 = vmatprep.subr.bf16.mxu0 0
        %2136 = vmatpush2.bf16.msra.mxu0 0
        %2137 = vmatprep.subr.bf16.mxu0 0
        %2138 = vmatpush2.bf16.msra.mxu0 0
        %2139 = vmatprep.subr.bf16.mxu0 0
        %2140 = vmatpush2.bf16.msra.mxu0 0
        %2141 = vmatprep.mubr.bf16.mxu0 0
        %2142 = vmatmul.mubr.bf16.gmra.mxu0 %v2012
        %v2143 = vpop.f32.mrf.mxu0
        %v2144 = vadd.f32 0.0, %v2143
        %v2145 = vpop.f32.mrf.mxu0
        %v2146 = vadd.f32 0.0, %v2145
        %v2147 = vpop.f32.mrf.mxu0
        %v2148 = vpop.f32.mrf.mxu0
        %2149 = vdwg.mxu0
        %v2150 = vxor.u32 %v2146, 2147483648
        %v2151 = vmul.f32 %v2150, 1.442695
        %v2152 = vpow.pop %v2151
        %v2153 = vadd.f32 %v2152, 1.0
        %v2154 = vrcp.pop %v2153
        %v2155 = vmul.f32 1.0, %v2154
        %v2156 = vmul.f32 %v2146, %v2155
        %v2157 = vmul.f32 %v2144, %v2156
        %v2158 = vpack.c.bf16 %v2157, %v2157
        %v2159 = vld [vmem:[#allocation13] sm:$0xf]
        %v2160 = vld [vmem:[#allocation13 + $0x4] sm:$0xf]
        %v2161 = vld [vmem:[#allocation13 + $0x8] sm:$0xf]
        %v2162 = vld [vmem:[#allocation13 + $0xc] sm:$0xf]
        %v2163 = vld [vmem:[#allocation13 + $0x10] sm:$0xf]
        %v2164 = vld [vmem:[#allocation13 + $0x14] sm:$0xf]
        %v2165 = vld [vmem:[#allocation13 + $0x18] sm:$0xf]
        %v2166 = vld [vmem:[#allocation13 + $0x1c] sm:$0xf]
        %v2167 = vld [vmem:[#allocation13 + $0x20] sm:$0xf]
        %v2168 = vld [vmem:[#allocation13 + $0x24] sm:$0xf]
        %v2169 = vld [vmem:[#allocation13 + $0x28] sm:$0xf]
        %v2170 = vld [vmem:[#allocation13 + $0x2c] sm:$0xf]
        %v2171 = vld [vmem:[#allocation13 + $0x30] sm:$0xf]
        %v2172 = vld [vmem:[#allocation13 + $0x34] sm:$0xf]
        %v2173 = vld [vmem:[#allocation13 + $0x38] sm:$0xf]
        %v2174 = vld [vmem:[#allocation13 + $0x3c] sm:$0xf]
        %v2191 = vunpack.c.l.b16 %v2159
        %v2192 = vunpack.c.l.b16 %v2160
        %v2193 = vunpack.c.l.b16 %v2161
        %v2194 = vunpack.c.l.b16 %v2162
        %v2195 = vunpack.c.l.b16 %v2163
        %v2196 = vunpack.c.l.b16 %v2164
        %v2197 = vunpack.c.l.b16 %v2165
        %v2198 = vunpack.c.l.b16 %v2166
        %v2199 = vunpack.c.l.b16 %v2167
        %v2200 = vunpack.c.l.b16 %v2168
        %v2201 = vunpack.c.l.b16 %v2169
        %v2202 = vunpack.c.l.b16 %v2170
        %v2203 = vunpack.c.l.b16 %v2171
        %v2204 = vunpack.c.l.b16 %v2172
        %v2205 = vunpack.c.l.b16 %v2173
        %v2206 = vunpack.c.l.b16 %v2174
        %v2207 = vpack.c.b16 %v2192, %v2191
        %v2208 = vpack.c.b16 %v2194, %v2193
        %v2209 = vpack.c.b16 %v2196, %v2195
        %v2210 = vpack.c.b16 %v2198, %v2197
        %v2211 = vpack.c.b16 %v2200, %v2199
        %v2212 = vpack.c.b16 %v2202, %v2201
        %v2213 = vpack.c.b16 %v2204, %v2203
        %v2214 = vpack.c.b16 %v2206, %v2205
        %2223 = vmatprep.subr.bf16.mxu0 0
        %2224 = vmatpush1.bf16.msra.mxu0 %v2214
        %2225 = vmatprep.subr.bf16.mxu0 0
        %2226 = vmatpush1.bf16.msra.mxu0 %v2213
        %2227 = vmatprep.subr.bf16.mxu0 0
        %2228 = vmatpush1.bf16.msra.mxu0 %v2212
        %2229 = vmatprep.subr.bf16.mxu0 0
        %2230 = vmatpush1.bf16.msra.mxu0 %v2211
        %2231 = vmatprep.subr.bf16.mxu0 0
        %2232 = vmatpush1.bf16.msra.mxu0 %v2210
        %2233 = vmatprep.subr.bf16.mxu0 0
        %2234 = vmatpush1.bf16.msra.mxu0 %v2209
        %2235 = vmatprep.subr.bf16.mxu0 0
        %2236 = vmatpush1.bf16.msra.mxu0 %v2208
        %2237 = vmatprep.subr.bf16.mxu0 0
        %2238 = vmatpush1.bf16.msra.mxu0 %v2207
        %2239 = vmatprep.subr.bf16.mxu0 0
        %2240 = vmatpush2.bf16.msra.mxu0 0
        %2241 = vmatprep.subr.bf16.mxu0 0
        %2242 = vmatpush2.bf16.msra.mxu0 0
        %2243 = vmatprep.subr.bf16.mxu0 0
        %2244 = vmatpush2.bf16.msra.mxu0 0
        %2245 = vmatprep.subr.bf16.mxu0 0
        %2246 = vmatpush2.bf16.msra.mxu0 0
        %2247 = vmatprep.subr.bf16.mxu0 0
        %2248 = vmatpush2.bf16.msra.mxu0 0
        %2249 = vmatprep.subr.bf16.mxu0 0
        %2250 = vmatpush2.bf16.msra.mxu0 0
        %2251 = vmatprep.subr.bf16.mxu0 0
        %2252 = vmatpush2.bf16.msra.mxu0 0
        %2253 = vmatprep.subr.bf16.mxu0 0
        %2254 = vmatpush2.bf16.msra.mxu0 0
        %2255 = vmatprep.mubr.bf16.mxu0 0
        %2256 = vmatmul.mubr.bf16.gmra.mxu0 %v2158
        %v2257 = vpop.f32.mrf.mxu0
        %v2258 = vadd.f32 0.0, %v2257
        %v2259 = vpop.f32.mrf.mxu0
        %v2260 = vpop.f32.mrf.mxu0
        %v2261 = vpop.f32.mrf.mxu0
        %2262 = vdwg.mxu0
        %v2263 = vadd.f32 %v2003, %v2258
        %2264 = vst [vmem:[%s407] sm:$0xff] %v2263
        %s2265 = sand.u32 %s209, 1
        %s2266 = scalar_lea.sflag [#allocation4], %s2265
        %s2267 = sand.u32 %s209, 1
        %s2268 = smul.addr %s2267, 8
        %s2269 = scalar_lea.vmem [#allocation14], %s2268
        // Predicated region
        $region81: #{block_forward.1} parent=51 // pred_check
          %p2270 = pneg %p219
        $region82: #{block_forward.1} parent=51 // pred_check_branch
          %2272 = sbr.rel (%p2270) target = $region84
        $region83: #{block_forward.1} parent=51 // pred_region
          %s2274 = ssub.s32 128, 128
          %2275 = vsyncadd %s2266, %s2274
          %s2276 = smul.addr %s28, 128
          %s2277 = scalar_lea.hbm %s8, %s2276
          %s2279 = sshll.u32 %s2269, 4
          %s2280 = int_to_ptr.vmem [resolvable:$true] %s2279
          %2282 = dma.vmem_to_hbm [thread:$0]  %s2280, 128, %s2277, %s2266
        $region84: #{block_forward.1} parent=51 // pred_fallthru
          _
      $region52: #{block_forward.1} parent=5 // pred_fallthru
        _
      %p2283 = scmp.le.s32.totalorder 2, %s23
      // Predicated region
      $region85: #{block_forward.1} parent=5 // pred_check
        %p2284 = pneg %p2283
      $region86: #{block_forward.1} parent=5 // pred_check_branch
        %2286 = sbr.rel (%p2284) target = $region88
      $region87: #{block_forward.1} parent=5 // pred_region
        %s2287 = ssub.s32 %s23, 2
        // Predicated region
        $region89: #{block_forward.1} parent=87 // pred_check
          %p2288 = pneg %p225
        $region90: #{block_forward.1} parent=87 // pred_check_branch
          %2290 = sbr.rel (%p2288) target = $region92
        $region91: #{block_forward.1} parent=87 // pred_region
          %s2291 = sand.u32 %s210, 1
          %s2292 = scalar_lea.sflag [#allocation4], %s2291
          %s2293 = sand.u32 %s210, 1
          %s2294 = smul.addr %s2293, 8
          %s2295 = scalar_lea.vmem [#allocation14], %s2294
          %2296 = dma.done %s2292, 128
        $region92: #{block_forward.1} parent=87 // pred_fallthru
          _
      $region88: #{block_forward.1} parent=5 // pred_fallthru
        _
    $region6: #{block_forward.1} parent=1 // loop_footer
      %s27 = sadd.s32 1, %s23
    $region7: #{block_forward.1} parent=1 // loop_footer_branch
      %22 = sbr.rel target = $region3
    $region8: #{block_forward.1} parent=1 // loop_exit
      _
    %2297 = vsyncpa [#allocation3], 1
    %s2298 = scalar_lea.sflag [#allocation3], 1
    %2299 = vsyncpa %s2298, 1
    %2300 = vsyncpa [#allocation6], 1
    %2301 = vsyncpa [#allocation9], 1
    %2302 = vsyncpa [#allocation12], 1
    %2303 = vsyncpa [#allocation4], 1
    %s2304 = scalar_lea.sflag [#allocation4], 1
    %2305 = vsyncpa %s2304, 1

</llo_original>
